<compile_context>
chip_gen: v7x
topology: tpu7x:2x2x1
jax: 0.10.0
libtpu: 0.0.40
codegen_flags: <defaults>
</compile_context>

<pallas_src>
import functools
import math

import jax
import jax.numpy as jnp
from jax.experimental import pallas as pl
from jax.experimental.pallas import tpu as pltpu


def _layernorm(v, eps):
    mu = jnp.mean(v, axis=-1, keepdims=True)
    var = jnp.mean((v - mu) ** 2, axis=-1, keepdims=True)
    return (v - mu) * jax.lax.rsqrt(var + eps)


def dit_block_kernel(mod_ref, x_ref, q_ref, kt_ref, v_ref,
                     w_p_ref, b_p_ref,
                     w_fc1_ref, b_fc1_ref, w_fc2_ref, b_fc2_ref,
                     o_ref,
                     m_scr, l_scr, acc_scr,
                     *, num_heads, eps, compute_dtype):
    ki = pl.program_id(2)
    nkv = pl.num_programs(2)

    @pl.when(ki == 0)
    def _init():
        m_scr[...] = jnp.full_like(m_scr, -jnp.inf)
        l_scr[...] = jnp.zeros_like(l_scr)
        acc_scr[...] = jnp.zeros_like(acc_scr)

    # ---- flash-style online-softmax update over this KV tile, all heads ----
    q = q_ref[0]                          # (H, TQ, D) bf16, pre-scaled by 1/sqrt(D)
    kt = kt_ref[0]                        # (H, D, TK) bf16 (pre-transposed)
    v = v_ref[0]                          # (H, TK, D) bf16

    s = jnp.einsum("hqd,hdk->hqk", q, kt,
                   preferred_element_type=jnp.float32)          # (H, TQ, TK) f32

    m_prev = m_scr[...]                                          # (H, TQ, 1)
    m_new = jnp.maximum(m_prev, jnp.max(s, axis=-1, keepdims=True))
    alpha = jnp.exp(m_prev - m_new)
    # exp in compute_dtype (bf16 EUP on v6e/v7x); set compute_dtype=f32 on v5e
    # if full-precision exponentials are required.
    p = jnp.exp((s - m_new).astype(compute_dtype))               # (H, TQ, TK)
    l_scr[...] = alpha * l_scr[...] + jnp.sum(p, axis=-1, keepdims=True,
                                              dtype=jnp.float32)
    acc_scr[...] = alpha * acc_scr[...] + jnp.einsum(
        "hqk,hkd->hqd", p, v, preferred_element_type=jnp.float32)
    m_scr[...] = m_new

    @pl.when(ki == nkv - 1)
    def _finalize():
        mod = mod_ref[0]                                         # (6, C) f32
        gate_msa = mod[2:3]
        shift_mlp, scale_mlp, gate_mlp = mod[3:4], mod[4:5], mod[5:6]

        # Pack heads into a (TQ, C) slab once, then one fused output projection.
        heads = [acc_scr[h] * pl.reciprocal(l_scr[h], approx=True)
                 for h in range(num_heads)]                      # each (TQ, D)
        attn_in = jnp.concatenate(heads, axis=-1).astype(compute_dtype)  # (TQ, C)
        attn = jnp.dot(attn_in, w_p_ref[...],
                       preferred_element_type=jnp.float32) + b_p_ref[...]

        x = x_ref[0].astype(jnp.float32)
        x1 = x + gate_msa * attn

        # MLP branch: modulate(norm2(x1)) -> fc1 -> GELU(tanh) -> fc2
        xm2 = (_layernorm(x1, eps) * (1.0 + scale_mlp) + shift_mlp
               ).astype(compute_dtype)
        h1 = jnp.dot(xm2, w_fc1_ref[...],
                     preferred_element_type=jnp.float32) + b_fc1_ref[...]
        c0 = math.sqrt(2.0 / math.pi)
        h1 = 0.5 * h1 * (1.0 + jnp.tanh(c0 * (h1 + 0.044715 * h1 ** 3)))
        h2 = jnp.dot(h1.astype(compute_dtype), w_fc2_ref[...],
                     preferred_element_type=jnp.float32) + b_fc2_ref[...]

        o_ref[0] = (x1 + gate_mlp * h2).astype(o_ref.dtype)


def prepare_params(params, compute_dtype=jnp.bfloat16):
    """One-time weight re-layout / casts (do NOT call per step; cache result)."""
    cd = compute_dtype
    w_qkv = jnp.concatenate([params["w_q"], params["w_k"], params["w_v"]],
                            axis=1).astype(cd)                    # (C, 3C)
    b_qkv = jnp.concatenate([params["b_q"], params["b_k"], params["b_v"]],
                            axis=1).astype(jnp.float32)           # (1, 3C)
    return {
        "w_ada": params["w_ada"].astype(jnp.float32),
        "b_ada": params["b_ada"].astype(jnp.float32),
        "w_qkv": w_qkv,
        "b_qkv": b_qkv,
        "w_proj": params["w_proj"].astype(cd),                    # (C, C)
        "b_proj": params["b_proj"].astype(jnp.float32),           # (1, C)
        "w_fc1": params["w_fc1"].astype(cd),
        "b_fc1": params["b_fc1"].astype(jnp.float32),
        "w_fc2": params["w_fc2"].astype(cd),
        "b_fc2": params["b_fc2"].astype(jnp.float32),
    }


def _default_vmem_limit():
    try:
        cap = pltpu.get_tpu_info().vmem_capacity_bytes
    except Exception:
        cap = 128 * 1024 * 1024
    # ~100 MiB on 128-MiB parts (v5e/v6e), ~51 MiB on v7x (64 MiB/TC).
    return min(100 * 1024 * 1024, int(cap * 0.8))


def dit_block(x, c, prep, num_heads, eps=1e-6,
              compute_dtype=jnp.bfloat16, q_tile=256, kv_tile=256):
    """adaLN-Zero DiT block forward (attn_mask=None, dropout=0)."""
    B, N, C = x.shape
    H = num_heads
    D = C // H
    assert C == H * D, "hidden size must be divisible by num_heads"
    cd = compute_dtype

    # ---- adaLN modulation (hoisted: one batched matmul in XLA) ----
    silu = c * jax.nn.sigmoid(c)
    mod = (silu @ prep["w_ada"] + prep["b_ada"][0]).reshape(B, 6, C)
    mod = mod.astype(jnp.float32)
    shift_msa = mod[:, 0][:, None, :]
    scale_msa = mod[:, 1][:, None, :]

    # ---- modulated LayerNorm + QKV projection (hoisted: one bf16 matmul) ----
    xf = x.astype(jnp.float32)
    mu = jnp.mean(xf, axis=-1, keepdims=True)
    var = jnp.mean((xf - mu) ** 2, axis=-1, keepdims=True)
    xm = (xf - mu) * jax.lax.rsqrt(var + eps) * (1.0 + scale_msa) + shift_msa

    qkv = jnp.einsum("bnc,ck->bnk", xm.astype(cd), prep["w_qkv"],
                     preferred_element_type=jnp.float32) + prep["b_qkv"][0]
    qkv = qkv.reshape(B, N, 3, H, D).transpose(2, 0, 3, 1, 4)     # (3, B, H, N, D)
    q = (qkv[0] * (1.0 / math.sqrt(D))).astype(cd)                # (B, H, N, D)
    kt = jnp.swapaxes(qkv[1], -1, -2).astype(cd)                  # (B, H, D, N)
    v = qkv[2].astype(cd)                                         # (B, H, N, D)

    # ---- tiling ----
    # v5e/v6e (128 MiB VMEM) can profitably use 512 tiles; v7x keep 256.
    TQ = min(q_tile, N)
    TK = min(kv_tile, N)
    assert N % TQ == 0 and N % TK == 0, "sequence length must divide the tiles"
    nq, nkv = N // TQ, N // TK
    # NOTE(v7x): both TensorCores only get work when B * nq >= 2.

    weights = [prep["w_proj"], prep["b_proj"],
               prep["w_fc1"], prep["b_fc1"], prep["w_fc2"], prep["b_fc2"]]

    def const_spec(a):
        nd = a.ndim
        # Grid-invariant -> fetched once; single buffer (no double-buffer waste).
        return pl.BlockSpec(a.shape, lambda b, qi, ki, _nd=nd: (0,) * _nd,
                            pipeline_mode=pl.Buffered(1))

    in_specs = (
        [pl.BlockSpec((1, 6, C), lambda b, qi, ki: (b, 0, 0)),        # modulation
         pl.BlockSpec((1, TQ, C), lambda b, qi, ki: (b, qi, 0)),      # x (residual)
         pl.BlockSpec((1, H, TQ, D), lambda b, qi, ki: (b, 0, qi, 0)),  # q
         pl.BlockSpec((1, H, D, TK), lambda b, qi, ki: (b, 0, 0, ki)),  # k^T
         pl.BlockSpec((1, H, TK, D), lambda b, qi, ki: (b, 0, ki, 0))]  # v
        + [const_spec(a) for a in weights])

    kernel = functools.partial(dit_block_kernel, num_heads=H, eps=eps,
                               compute_dtype=cd)

    return pl.pallas_call(
        kernel,
        out_shape=jax.ShapeDtypeStruct((B, N, C), x.dtype),
        grid_spec=pltpu.PrefetchScalarGridSpec(
            num_scalar_prefetch=0,
            grid=(B, nq, nkv),
            in_specs=in_specs,
            out_specs=pl.BlockSpec((1, TQ, C), lambda b, qi, ki: (b, qi, 0)),
            scratch_shapes=[
                pltpu.VMEM((H, TQ, 1), jnp.float32),   # running max
                pltpu.VMEM((H, TQ, 1), jnp.float32),   # running denominator
                pltpu.VMEM((H, TQ, D), jnp.float32),   # attention numerator
            ]),
        compiler_params=pltpu.CompilerParams(
            dimension_semantics=("parallel", "parallel", "arbitrary"),
            vmem_limit_bytes=_default_vmem_limit()),
    )(mod, x, q, kt, v, *weights)


def init_params(key, C, mlp_hidden):
    ks = jax.random.split(key, 14)
    s = 0.05
    f32 = jnp.float32
    return {
        "w_ada":  jax.random.normal(ks[0],  (C, 6 * C), f32) * s,
        "b_ada":  jax.random.normal(ks[1],  (1, 6 * C), f32) * s,
        "w_q":    jax.random.normal(ks[2],  (C, C), f32) * s,
        "b_q":    jax.random.normal(ks[3],  (1, C), f32) * s,
        "w_k":    jax.random.normal(ks[4],  (C, C), f32) * s,
        "b_k":    jax.random.normal(ks[5],  (1, C), f32) * s,
        "w_v":    jax.random.normal(ks[6],  (C, C), f32) * s,
        "b_v":    jax.random.normal(ks[7],  (1, C), f32) * s,
        "w_proj": jax.random.normal(ks[8],  (C, C), f32) * s,
        "b_proj": jax.random.normal(ks[9],  (1, C), f32) * s,
        "w_fc1":  jax.random.normal(ks[10], (C, mlp_hidden), f32) * s,
        "b_fc1":  jax.random.normal(ks[11], (1, mlp_hidden), f32) * s,
        "w_fc2":  jax.random.normal(ks[12], (mlp_hidden, C), f32) * s,
        "b_fc2":  jax.random.normal(ks[13], (1, C), f32) * s,
    }


def dit_block_ref(x, c, params, num_heads, eps=1e-6):
    """Pure-JAX f32 reference mirroring the PyTorch DiTBlock forward (mask=None)."""
    B, N, C = x.shape
    D = C // num_heads
    silu = c * jax.nn.sigmoid(c)
    ada = silu @ params["w_ada"] + params["b_ada"][0]
    shift_msa, scale_msa, gate_msa, shift_mlp, scale_mlp, gate_mlp = jnp.split(
        ada, 6, axis=1)

    def ln(v):
        mu = v.mean(-1, keepdims=True)
        var = ((v - mu) ** 2).mean(-1, keepdims=True)
        return (v - mu) / jnp.sqrt(var + eps)

    xm = ln(x) * (1 + scale_msa[:, None, :]) + shift_msa[:, None, :]
    q = xm @ params["w_q"] + params["b_q"][0]
    k = xm @ params["w_k"] + params["b_k"][0]
    v = xm @ params["w_v"] + params["b_v"][0]
    qh = q.reshape(B, N, num_heads, D).transpose(0, 2, 1, 3)
    kh = k.reshape(B, N, num_heads, D).transpose(0, 2, 1, 3)
    vh = v.reshape(B, N, num_heads, D).transpose(0, 2, 1, 3)
    attn = jnp.einsum("bhqd,bhkd->bhqk", qh, kh) / math.sqrt(D)
    attn = jax.nn.softmax(attn, axis=-1)
    o = jnp.einsum("bhqk,bhkd->bhqd", attn, vh).transpose(0, 2, 1, 3).reshape(B, N, C)
    o = o @ params["w_proj"] + params["b_proj"][0]
    x1 = x + gate_msa[:, None, :] * o

    xm2 = ln(x1) * (1 + scale_mlp[:, None, :]) + shift_mlp[:, None, :]
    h1 = xm2 @ params["w_fc1"] + params["b_fc1"][0]
    h1 = jax.nn.gelu(h1, approximate=True)
    h2 = h1 @ params["w_fc2"] + params["b_fc2"][0]
    return x1 + gate_mlp[:, None, :] * h2


if __name__ == "__main__":
    B, N, C, H = 2, 8, 32, 4           # batch, seq, hidden, heads
    mlp_hidden = int(C * 4.0)

    key = jax.random.PRNGKey(0)
    kx, kc, kp = jax.random.split(key, 3)
    x = jax.random.normal(kx, (B, N, C), jnp.float32)
    c = jax.random.normal(kc, (B, C), jnp.float32)
    params = init_params(kp, C, mlp_hidden)

    prep = prepare_params(params)       # one-time weight layout / bf16 cast
    out = dit_block(x, c, prep, H)
    out = jax.block_until_ready(out)

    ref = dit_block_ref(x, c, params, H)
    max_err = float(jnp.max(jnp.abs(out - ref)))
    # bf16 matmul operands + bf16 exponentials + approx reciprocal vs f32 ref.
    assert max_err < 2e-2, f"mismatch vs reference: {max_err}"
    print("KERNEL_OK")
</pallas_src>

<mosaic_0001>
module attributes {stable_mosaic.version = 11 : i64} {
  func.func @dit_block_kernel(%arg0: i32, %arg1: i32, %arg2: i32, %arg3: memref<1x6x32xf32, #tpu.memory_space<vmem>>, %arg4: memref<1x8x32xf32, #tpu.memory_space<vmem>>, %arg5: memref<1x4x8x8xbf16, #tpu.memory_space<vmem>>, %arg6: memref<1x4x8x8xbf16, #tpu.memory_space<vmem>>, %arg7: memref<1x4x8x8xbf16, #tpu.memory_space<vmem>>, %arg8: memref<32x32xbf16, #tpu.memory_space<vmem>>, %arg9: memref<1x32xf32, #tpu.memory_space<vmem>>, %arg10: memref<32x128xbf16, #tpu.memory_space<vmem>>, %arg11: memref<1x128xf32, #tpu.memory_space<vmem>>, %arg12: memref<128x32xbf16, #tpu.memory_space<vmem>>, %arg13: memref<1x32xf32, #tpu.memory_space<vmem>>, %arg14: memref<1x8x32xf32, #tpu.memory_space<vmem>>, %arg15: memref<4x8x1xf32, #tpu.memory_space<vmem>>, %arg16: memref<4x8x1xf32, #tpu.memory_space<vmem>>, %arg17: memref<4x8x8xf32, #tpu.memory_space<vmem>>) attributes {dimension_semantics = [#tpu.dimension_semantics<parallel>, #tpu.dimension_semantics<parallel>, #tpu.dimension_semantics<arbitrary>], iteration_bounds = array<i64: 2, 1, 1>, scalar_prefetch = 0 : i64, scratch_operands = 3 : i64, tpu.core_type = #tpu.core_type<tc>, window_params = [{transform_indices = @transform_0, window_bounds = array<i64: 1, 6, 32>}, {transform_indices = @transform_1, window_bounds = array<i64: 1, 8, 32>}, {transform_indices = @transform_2, window_bounds = array<i64: 1, 4, 8, 8>}, {transform_indices = @transform_3, window_bounds = array<i64: 1, 4, 8, 8>}, {transform_indices = @transform_4, window_bounds = array<i64: 1, 4, 8, 8>}, {pipeline_mode = #tpu.pipeline_mode<synchronous>, transform_indices = @transform_5, window_bounds = array<i64: 32, 32>}, {pipeline_mode = #tpu.pipeline_mode<synchronous>, transform_indices = @transform_6, window_bounds = array<i64: 1, 32>}, {pipeline_mode = #tpu.pipeline_mode<synchronous>, transform_indices = @transform_7, window_bounds = array<i64: 32, 128>}, {pipeline_mode = #tpu.pipeline_mode<synchronous>, transform_indices = @transform_8, window_bounds = array<i64: 1, 128>}, {pipeline_mode = #tpu.pipeline_mode<synchronous>, transform_indices = @transform_9, window_bounds = array<i64: 128, 32>}, {pipeline_mode = #tpu.pipeline_mode<synchronous>, transform_indices = @transform_10, window_bounds = array<i64: 1, 32>}, {transform_indices = @transform_11, window_bounds = array<i64: 1, 8, 32>}]} {
    %c0_i32 = arith.constant 0 : i32
    %0 = arith.cmpi eq, %arg2, %c0_i32 : i32
    %1 = arith.extui %0 : i1 to i32
    %c0_i32_0 = arith.constant 0 : i32
    %2 = arith.cmpi ne, %1, %c0_i32_0 : i32
    scf.if %2 {
      %cst_35 = arith.constant 0xFF800000 : f32
      %37 = vector.broadcast %cst_35 : f32 to vector<4x8x1xf32>
      %c0_36 = arith.constant 0 : index
      %c0_37 = arith.constant 0 : index
      %c0_38 = arith.constant 0 : index
      %38 = vector.load %arg15[%c0_36, %c0_37, %c0_38] : memref<4x8x1xf32, #tpu.memory_space<vmem>>, vector<4x8x1xf32>
      tpu.vector_store %arg15[%c0_36, %c0_37, %c0_38], %37 {strides = array<i32>} : memref<4x8x1xf32, #tpu.memory_space<vmem>>, vector<4x8x1xf32>,
      %cst_39 = arith.constant 0.000000e+00 : f32
      %39 = vector.broadcast %cst_39 : f32 to vector<4x8x1xf32>
      %c0_40 = arith.constant 0 : index
      %c0_41 = arith.constant 0 : index
      %c0_42 = arith.constant 0 : index
      %40 = vector.load %arg16[%c0_40, %c0_41, %c0_42] : memref<4x8x1xf32, #tpu.memory_space<vmem>>, vector<4x8x1xf32>
      tpu.vector_store %arg16[%c0_40, %c0_41, %c0_42], %39 {strides = array<i32>} : memref<4x8x1xf32, #tpu.memory_space<vmem>>, vector<4x8x1xf32>,
      %cst_43 = arith.constant 0.000000e+00 : f32
      %41 = vector.broadcast %cst_43 : f32 to vector<4x8x8xf32>
      %c0_44 = arith.constant 0 : index
      %c0_45 = arith.constant 0 : index
      %c0_46 = arith.constant 0 : index
      %42 = vector.load %arg17[%c0_44, %c0_45, %c0_46] : memref<4x8x8xf32, #tpu.memory_space<vmem>>, vector<4x8x8xf32>
      tpu.vector_store %arg17[%c0_44, %c0_45, %c0_46], %41 {strides = array<i32>} : memref<4x8x8xf32, #tpu.memory_space<vmem>>, vector<4x8x8xf32>,
    } else {
    }
    %c0 = arith.constant 0 : index
    %c0_1 = arith.constant 0 : index
    %c0_2 = arith.constant 0 : index
    %c0_3 = arith.constant 0 : index
    %3 = vector.load %arg5[%c0, %c0_1, %c0_2, %c0_3] : memref<1x4x8x8xbf16, #tpu.memory_space<vmem>>, vector<1x4x8x8xbf16>
    %4 = vector.shape_cast %3 : vector<1x4x8x8xbf16> to vector<4x8x8xbf16>
    %c0_4 = arith.constant 0 : index
    %c0_5 = arith.constant 0 : index
    %c0_6 = arith.constant 0 : index
    %c0_7 = arith.constant 0 : index
    %5 = vector.load %arg6[%c0_4, %c0_5, %c0_6, %c0_7] : memref<1x4x8x8xbf16, #tpu.memory_space<vmem>>, vector<1x4x8x8xbf16>
    %6 = vector.shape_cast %5 : vector<1x4x8x8xbf16> to vector<4x8x8xbf16>
    %c0_8 = arith.constant 0 : index
    %c0_9 = arith.constant 0 : index
    %c0_10 = arith.constant 0 : index
    %c0_11 = arith.constant 0 : index
    %7 = vector.load %arg7[%c0_8, %c0_9, %c0_10, %c0_11] : memref<1x4x8x8xbf16, #tpu.memory_space<vmem>>, vector<1x4x8x8xbf16>
    %8 = vector.shape_cast %7 : vector<1x4x8x8xbf16> to vector<4x8x8xbf16>
    "tpu.trace_start"() <{level = 10 : i32, message = "hqd,hdk->hqk"}> : () -> ()
    %cst = arith.constant dense<0.000000e+00> : vector<4x8x8xf32>
    %9 = tpu.matmul %4, %6, %cst {dimension_numbers = #tpu.dot_dimension_numbers<[2], [1], [1], [2], [0, 0, 0, 1, 1, 2], [0], [0]>} : vector<4x8x8xbf16>, vector<4x8x8xbf16>, vector<4x8x8xf32> -> vector<4x8x8xf32>
    "tpu.trace_stop"() : () -> ()
    %c0_12 = arith.constant 0 : index
    %c0_13 = arith.constant 0 : index
    %c0_14 = arith.constant 0 : index
    %10 = vector.load %arg15[%c0_12, %c0_13, %c0_14] : memref<4x8x1xf32, #tpu.memory_space<vmem>>, vector<4x8x1xf32>
    %cst_15 = arith.constant dense<0xFF800000> : vector<4x8xf32>
    %11 = vector.multi_reduction <maximumf>, %9, %cst_15 [2] : vector<4x8x8xf32> to vector<4x8xf32>
    %12 = vector.shape_cast %11 : vector<4x8xf32> to vector<4x8x1xf32>
    %13 = arith.maximumf %10, %12 : vector<4x8x1xf32>
    %14 = arith.subf %10, %13 : vector<4x8x1xf32>
    %15 = math.exp %14 : vector<4x8x1xf32>
    %16 = vector.broadcast %13 : vector<4x8x1xf32> to vector<4x8x8xf32>
    %17 = arith.subf %9, %16 : vector<4x8x8xf32>
    %18 = arith.truncf %17 : vector<4x8x8xf32> to vector<4x8x8xbf16>
    %19 = math.exp %18 : vector<4x8x8xbf16>
    %c0_16 = arith.constant 0 : index
    %c0_17 = arith.constant 0 : index
    %c0_18 = arith.constant 0 : index
    %20 = vector.load %arg16[%c0_16, %c0_17, %c0_18] : memref<4x8x1xf32, #tpu.memory_space<vmem>>, vector<4x8x1xf32>
    %21 = arith.mulf %15, %20 : vector<4x8x1xf32>
    %22 = arith.extf %19 : vector<4x8x8xbf16> to vector<4x8x8xf32>
    %cst_19 = arith.constant dense<0.000000e+00> : vector<4x8xf32>
    %23 = vector.multi_reduction <add>, %22, %cst_19 [2] : vector<4x8x8xf32> to vector<4x8xf32>
    %24 = vector.shape_cast %23 : vector<4x8xf32> to vector<4x8x1xf32>
    %25 = arith.addf %21, %24 : vector<4x8x1xf32>
    %c0_20 = arith.constant 0 : index
    %c0_21 = arith.constant 0 : index
    %c0_22 = arith.constant 0 : index
    %26 = vector.load %arg16[%c0_20, %c0_21, %c0_22] : memref<4x8x1xf32, #tpu.memory_space<vmem>>, vector<4x8x1xf32>
    tpu.vector_store %arg16[%c0_20, %c0_21, %c0_22], %25 {strides = array<i32>} : memref<4x8x1xf32, #tpu.memory_space<vmem>>, vector<4x8x1xf32>,
    %c0_23 = arith.constant 0 : index
    %c0_24 = arith.constant 0 : index
    %c0_25 = arith.constant 0 : index
    %27 = vector.load %arg17[%c0_23, %c0_24, %c0_25] : memref<4x8x8xf32, #tpu.memory_space<vmem>>, vector<4x8x8xf32>
    %28 = vector.broadcast %15 : vector<4x8x1xf32> to vector<4x8x8xf32>
    %29 = arith.mulf %28, %27 : vector<4x8x8xf32>
    "tpu.trace_start"() <{level = 10 : i32, message = "hqk,hkd->hqd"}> : () -> ()
    %cst_26 = arith.constant dense<0.000000e+00> : vector<4x8x8xf32>
    %30 = tpu.matmul %19, %8, %cst_26 {dimension_numbers = #tpu.dot_dimension_numbers<[2], [1], [1], [2], [0, 0, 0, 1, 1, 2], [0], [0]>} : vector<4x8x8xbf16>, vector<4x8x8xbf16>, vector<4x8x8xf32> -> vector<4x8x8xf32>
    "tpu.trace_stop"() : () -> ()
    %31 = arith.addf %29, %30 : vector<4x8x8xf32>
    %c0_27 = arith.constant 0 : index
    %c0_28 = arith.constant 0 : index
    %c0_29 = arith.constant 0 : index
    %32 = vector.load %arg17[%c0_27, %c0_28, %c0_29] : memref<4x8x8xf32, #tpu.memory_space<vmem>>, vector<4x8x8xf32>
    tpu.vector_store %arg17[%c0_27, %c0_28, %c0_29], %31 {strides = array<i32>} : memref<4x8x8xf32, #tpu.memory_space<vmem>>, vector<4x8x8xf32>,
    %c0_30 = arith.constant 0 : index
    %c0_31 = arith.constant 0 : index
    %c0_32 = arith.constant 0 : index
    %33 = vector.load %arg15[%c0_30, %c0_31, %c0_32] : memref<4x8x1xf32, #tpu.memory_space<vmem>>, vector<4x8x1xf32>
    tpu.vector_store %arg15[%c0_30, %c0_31, %c0_32], %13 {strides = array<i32>} : memref<4x8x1xf32, #tpu.memory_space<vmem>>, vector<4x8x1xf32>,
    %c0_i32_33 = arith.constant 0 : i32
    %34 = arith.cmpi eq, %arg2, %c0_i32_33 : i32
    %35 = arith.extui %34 : i1 to i32
    %c0_i32_34 = arith.constant 0 : i32
    %36 = arith.cmpi ne, %35, %c0_i32_34 : i32
    scf.if %36 {
      %c0_35 = arith.constant 0 : index
      %c0_36 = arith.constant 0 : index
      %c0_37 = arith.constant 0 : index
      %37 = vector.load %arg3[%c0_35, %c0_36, %c0_37] : memref<1x6x32xf32, #tpu.memory_space<vmem>>, vector<1x6x32xf32>
      %38 = vector.shape_cast %37 : vector<1x6x32xf32> to vector<6x32xf32>
      %39 = vector.extract_strided_slice %38 {offsets = [2, 0], sizes = [1, 32], strides = [1, 1]} : vector<6x32xf32> to vector<1x32xf32>
      %40 = vector.extract_strided_slice %38 {offsets = [3, 0], sizes = [1, 32], strides = [1, 1]} : vector<6x32xf32> to vector<1x32xf32>
      %41 = vector.extract_strided_slice %38 {offsets = [4, 0], sizes = [1, 32], strides = [1, 1]} : vector<6x32xf32> to vector<1x32xf32>
      %42 = vector.extract_strided_slice %38 {offsets = [5, 0], sizes = [1, 32], strides = [1, 1]} : vector<6x32xf32> to vector<1x32xf32>
      %c0_38 = arith.constant 0 : index
      %c0_39 = arith.constant 0 : index
      %c0_40 = arith.constant 0 : index
      %43 = vector.load %arg17[%c0_38, %c0_39, %c0_40] : memref<4x8x8xf32, #tpu.memory_space<vmem>>, vector<1x8x8xf32>
      %44 = vector.shape_cast %43 : vector<1x8x8xf32> to vector<8x8xf32>
      %c0_41 = arith.constant 0 : index
      %c0_42 = arith.constant 0 : index
      %c0_43 = arith.constant 0 : index
      %45 = vector.load %arg16[%c0_41, %c0_42, %c0_43] : memref<4x8x1xf32, #tpu.memory_space<vmem>>, vector<1x8x1xf32>
      %46 = vector.shape_cast %45 : vector<1x8x1xf32> to vector<8x1xf32>
      %47 = tpu.reciprocal %46 {approx = true} : vector<8x1xf32> -> vector<8x1xf32>
      %48 = vector.broadcast %47 : vector<8x1xf32> to vector<8x8xf32>
      %49 = arith.mulf %44, %48 : vector<8x8xf32>
      %c1 = arith.constant 1 : index
      %c0_44 = arith.constant 0 : index
      %c0_45 = arith.constant 0 : index
      %50 = vector.load %arg17[%c1, %c0_44, %c0_45] : memref<4x8x8xf32, #tpu.memory_space<vmem>>, vector<1x8x8xf32>
      %51 = vector.shape_cast %50 : vector<1x8x8xf32> to vector<8x8xf32>
      %c1_46 = arith.constant 1 : index
      %c0_47 = arith.constant 0 : index
      %c0_48 = arith.constant 0 : index
      %52 = vector.load %arg16[%c1_46, %c0_47, %c0_48] : memref<4x8x1xf32, #tpu.memory_space<vmem>>, vector<1x8x1xf32>
      %53 = vector.shape_cast %52 : vector<1x8x1xf32> to vector<8x1xf32>
      %54 = tpu.reciprocal %53 {approx = true} : vector<8x1xf32> -> vector<8x1xf32>
      %55 = vector.broadcast %54 : vector<8x1xf32> to vector<8x8xf32>
      %56 = arith.mulf %51, %55 : vector<8x8xf32>
      %c2 = arith.constant 2 : index
      %c0_49 = arith.constant 0 : index
      %c0_50 = arith.constant 0 : index
      %57 = vector.load %arg17[%c2, %c0_49, %c0_50] : memref<4x8x8xf32, #tpu.memory_space<vmem>>, vector<1x8x8xf32>
      %58 = vector.shape_cast %57 : vector<1x8x8xf32> to vector<8x8xf32>
      %c2_51 = arith.constant 2 : index
      %c0_52 = arith.constant 0 : index
      %c0_53 = arith.constant 0 : index
      %59 = vector.load %arg16[%c2_51, %c0_52, %c0_53] : memref<4x8x1xf32, #tpu.memory_space<vmem>>, vector<1x8x1xf32>
      %60 = vector.shape_cast %59 : vector<1x8x1xf32> to vector<8x1xf32>
      %61 = tpu.reciprocal %60 {approx = true} : vector<8x1xf32> -> vector<8x1xf32>
      %62 = vector.broadcast %61 : vector<8x1xf32> to vector<8x8xf32>
      %63 = arith.mulf %58, %62 : vector<8x8xf32>
      %c3 = arith.constant 3 : index
      %c0_54 = arith.constant 0 : index
      %c0_55 = arith.constant 0 : index
      %64 = vector.load %arg17[%c3, %c0_54, %c0_55] : memref<4x8x8xf32, #tpu.memory_space<vmem>>, vector<1x8x8xf32>
      %65 = vector.shape_cast %64 : vector<1x8x8xf32> to vector<8x8xf32>
      %c3_56 = arith.constant 3 : index
      %c0_57 = arith.constant 0 : index
      %c0_58 = arith.constant 0 : index
      %66 = vector.load %arg16[%c3_56, %c0_57, %c0_58] : memref<4x8x1xf32, #tpu.memory_space<vmem>>, vector<1x8x1xf32>
      %67 = vector.shape_cast %66 : vector<1x8x1xf32> to vector<8x1xf32>
      %68 = tpu.reciprocal %67 {approx = true} : vector<8x1xf32> -> vector<8x1xf32>
      %69 = vector.broadcast %68 : vector<8x1xf32> to vector<8x8xf32>
      %70 = arith.mulf %65, %69 : vector<8x8xf32>
      %71 = tpu.concatenate %49, %56, %63, %70 in 1 : vector<8x8xf32>, vector<8x8xf32>, vector<8x8xf32>, vector<8x8xf32> -> vector<8x32xf32>
      %72 = arith.truncf %71 : vector<8x32xf32> to vector<8x32xbf16>
      %c0_59 = arith.constant 0 : index
      %c0_60 = arith.constant 0 : index
      %73 = vector.load %arg8[%c0_59, %c0_60] : memref<32x32xbf16, #tpu.memory_space<vmem>>, vector<32x32xbf16>
      %cst_61 = arith.constant dense<0.000000e+00> : vector<8x32xf32>
      %74 = tpu.matmul %72, %73, %cst_61 {dimension_numbers = #tpu.dot_dimension_numbers<[1], [0], [0], [1], [0, 0, 1, 1], [], []>} : vector<8x32xbf16>, vector<32x32xbf16>, vector<8x32xf32> -> vector<8x32xf32>
      %c0_62 = arith.constant 0 : index
      %c0_63 = arith.constant 0 : index
      %75 = vector.load %arg9[%c0_62, %c0_63] : memref<1x32xf32, #tpu.memory_space<vmem>>, vector<1x32xf32>
      %76 = vector.broadcast %75 : vector<1x32xf32> to vector<8x32xf32>
      %77 = arith.addf %74, %76 : vector<8x32xf32>
      %c0_64 = arith.constant 0 : index
      %c0_65 = arith.constant 0 : index
      %c0_66 = arith.constant 0 : index
      %78 = vector.load %arg4[%c0_64, %c0_65, %c0_66] : memref<1x8x32xf32, #tpu.memory_space<vmem>>, vector<1x8x32xf32>
      %79 = vector.shape_cast %78 : vector<1x8x32xf32> to vector<8x32xf32>
      %80 = vector.broadcast %39 : vector<1x32xf32> to vector<8x32xf32>
      %81 = arith.mulf %80, %77 : vector<8x32xf32>
      %82 = arith.addf %79, %81 : vector<8x32xf32>
      %cst_67 = arith.constant dense<0.000000e+00> : vector<8xf32>
      %83 = vector.multi_reduction <add>, %82, %cst_67 [1] : vector<8x32xf32> to vector<8xf32>
      %84 = vector.shape_cast %83 : vector<8xf32> to vector<8x1xf32>
      %cst_68 = arith.constant 3.200000e+01 : f32
      %85 = vector.broadcast %cst_68 : f32 to vector<8x1xf32>
      %86 = arith.divf %84, %85 : vector<8x1xf32>
      %87 = vector.broadcast %86 : vector<8x1xf32> to vector<8x32xf32>
      %88 = arith.subf %82, %87 : vector<8x32xf32>
      %89 = arith.mulf %88, %88 : vector<8x32xf32>
      %cst_69 = arith.constant dense<0.000000e+00> : vector<8xf32>
      %90 = vector.multi_reduction <add>, %89, %cst_69 [1] : vector<8x32xf32> to vector<8xf32>
      %91 = vector.shape_cast %90 : vector<8xf32> to vector<8x1xf32>
      %cst_70 = arith.constant 3.200000e+01 : f32
      %92 = vector.broadcast %cst_70 : f32 to vector<8x1xf32>
      %93 = arith.divf %91, %92 : vector<8x1xf32>
      %94 = vector.broadcast %86 : vector<8x1xf32> to vector<8x32xf32>
      %95 = arith.subf %82, %94 : vector<8x32xf32>
      %cst_71 = arith.constant 9.99999997E-7 : f32
      %96 = vector.broadcast %cst_71 : f32 to vector<8x1xf32>
      %97 = arith.addf %93, %96 : vector<8x1xf32>
      %98 = math.rsqrt %97 : vector<8x1xf32>
      %99 = vector.broadcast %98 : vector<8x1xf32> to vector<8x32xf32>
      %100 = arith.mulf %95, %99 : vector<8x32xf32>
      %cst_72 = arith.constant 1.000000e+00 : f32
      %101 = vector.broadcast %cst_72 : f32 to vector<1x32xf32>
      %102 = arith.addf %101, %41 : vector<1x32xf32>
      %103 = vector.broadcast %102 : vector<1x32xf32> to vector<8x32xf32>
      %104 = arith.mulf %100, %103 : vector<8x32xf32>
      %105 = vector.broadcast %40 : vector<1x32xf32> to vector<8x32xf32>
      %106 = arith.addf %104, %105 : vector<8x32xf32>
      %107 = arith.truncf %106 : vector<8x32xf32> to vector<8x32xbf16>
      %c0_73 = arith.constant 0 : index
      %c0_74 = arith.constant 0 : index
      %108 = vector.load %arg10[%c0_73, %c0_74] : memref<32x128xbf16, #tpu.memory_space<vmem>>, vector<32x128xbf16>
      %cst_75 = arith.constant dense<0.000000e+00> : vector<8x128xf32>
      %109 = tpu.matmul %107, %108, %cst_75 {dimension_numbers = #tpu.dot_dimension_numbers<[1], [0], [0], [1], [0, 0, 1, 1], [], []>} : vector<8x32xbf16>, vector<32x128xbf16>, vector<8x128xf32> -> vector<8x128xf32>
      %c0_76 = arith.constant 0 : index
      %c0_77 = arith.constant 0 : index
      %110 = vector.load %arg11[%c0_76, %c0_77] : memref<1x128xf32, #tpu.memory_space<vmem>>, vector<1x128xf32>
      %111 = vector.broadcast %110 : vector<1x128xf32> to vector<8x128xf32>
      %112 = arith.addf %109, %111 : vector<8x128xf32>
      %cst_78 = arith.constant 5.000000e-01 : f32
      %113 = vector.broadcast %cst_78 : f32 to vector<8x128xf32>
      %114 = arith.mulf %113, %112 : vector<8x128xf32>
      %115 = arith.mulf %112, %112 : vector<8x128xf32>
      %116 = arith.mulf %112, %115 : vector<8x128xf32>
      %cst_79 = arith.constant 4.471500e-02 : f32
      %117 = vector.broadcast %cst_79 : f32 to vector<8x128xf32>
      %118 = arith.mulf %117, %116 : vector<8x128xf32>
      %119 = arith.addf %112, %118 : vector<8x128xf32>
      %cst_80 = arith.constant 0.797884583 : f32
      %120 = vector.broadcast %cst_80 : f32 to vector<8x128xf32>
      %121 = arith.mulf %120, %119 : vector<8x128xf32>
      %122 = math.tanh %121 : vector<8x128xf32>
      %cst_81 = arith.constant 1.000000e+00 : f32
      %123 = vector.broadcast %cst_81 : f32 to vector<8x128xf32>
      %124 = arith.addf %123, %122 : vector<8x128xf32>
      %125 = arith.mulf %114, %124 : vector<8x128xf32>
      %126 = arith.truncf %125 : vector<8x128xf32> to vector<8x128xbf16>
      %c0_82 = arith.constant 0 : index
      %c0_83 = arith.constant 0 : index
      %127 = vector.load %arg12[%c0_82, %c0_83] : memref<128x32xbf16, #tpu.memory_space<vmem>>, vector<128x32xbf16>
      %cst_84 = arith.constant dense<0.000000e+00> : vector<8x32xf32>
      %128 = tpu.matmul %126, %127, %cst_84 {dimension_numbers = #tpu.dot_dimension_numbers<[1], [0], [0], [1], [0, 0, 1, 1], [], []>} : vector<8x128xbf16>, vector<128x32xbf16>, vector<8x32xf32> -> vector<8x32xf32>
      %c0_85 = arith.constant 0 : index
      %c0_86 = arith.constant 0 : index
      %129 = vector.load %arg13[%c0_85, %c0_86] : memref<1x32xf32, #tpu.memory_space<vmem>>, vector<1x32xf32>
      %130 = vector.broadcast %129 : vector<1x32xf32> to vector<8x32xf32>
      %131 = arith.addf %128, %130 : vector<8x32xf32>
      %132 = vector.broadcast %42 : vector<1x32xf32> to vector<8x32xf32>
      %133 = arith.mulf %132, %131 : vector<8x32xf32>
      %134 = arith.addf %82, %133 : vector<8x32xf32>
      %c0_87 = arith.constant 0 : index
      %c0_88 = arith.constant 0 : index
      %c0_89 = arith.constant 0 : index
      %135 = vector.load %arg14[%c0_87, %c0_88, %c0_89] : memref<1x8x32xf32, #tpu.memory_space<vmem>>, vector<1x8x32xf32>
      %136 = vector.shape_cast %135 : vector<1x8x32xf32> to vector<8x32xf32>
      %137 = vector.shape_cast %134 : vector<8x32xf32> to vector<1x8x32xf32>
      tpu.vector_store %arg14[%c0_87, %c0_88, %c0_89], %137 {strides = array<i32>} : memref<1x8x32xf32, #tpu.memory_space<vmem>>, vector<1x8x32xf32>,
    } else {
    }
    return
  }
  func.func @transform_0(%arg0: i32, %arg1: i32, %arg2: i32) -> (i32, i32, i32) {
    %c0_i32 = arith.constant 0 : i32
    %c0_i32_0 = arith.constant 0 : i32
    %c0_i32_1 = arith.constant 0 : i32
    return %arg0, %c0_i32, %c0_i32_0 : i32, i32, i32
  }
  func.func @transform_1(%arg0: i32, %arg1: i32, %arg2: i32) -> (i32, i32, i32) {
    %c0_i32 = arith.constant 0 : i32
    %c0_i32_0 = arith.constant 0 : i32
    return %arg0, %arg1, %c0_i32 : i32, i32, i32
  }
  func.func @transform_2(%arg0: i32, %arg1: i32, %arg2: i32) -> (i32, i32, i32, i32) {
    %c0_i32 = arith.constant 0 : i32
    %c0_i32_0 = arith.constant 0 : i32
    %c0_i32_1 = arith.constant 0 : i32
    return %arg0, %c0_i32, %arg1, %c0_i32_0 : i32, i32, i32, i32
  }
  func.func @transform_3(%arg0: i32, %arg1: i32, %arg2: i32) -> (i32, i32, i32, i32) {
    %c0_i32 = arith.constant 0 : i32
    %c0_i32_0 = arith.constant 0 : i32
    %c0_i32_1 = arith.constant 0 : i32
    return %arg0, %c0_i32, %c0_i32_0, %arg2 : i32, i32, i32, i32
  }
  func.func @transform_4(%arg0: i32, %arg1: i32, %arg2: i32) -> (i32, i32, i32, i32) {
    %c0_i32 = arith.constant 0 : i32
    %c0_i32_0 = arith.constant 0 : i32
    %c0_i32_1 = arith.constant 0 : i32
    return %arg0, %c0_i32, %arg2, %c0_i32_0 : i32, i32, i32, i32
  }
  func.func @transform_5(%arg0: i32, %arg1: i32, %arg2: i32) -> (i32, i32) {
    %c0_i32 = arith.constant 0 : i32
    %c0_i32_0 = arith.constant 0 : i32
    %c0_i32_1 = arith.constant 0 : i32
    return %c0_i32, %c0_i32_0 : i32, i32
  }
  func.func @transform_6(%arg0: i32, %arg1: i32, %arg2: i32) -> (i32, i32) {
    %c0_i32 = arith.constant 0 : i32
    %c0_i32_0 = arith.constant 0 : i32
    %c0_i32_1 = arith.constant 0 : i32
    return %c0_i32, %c0_i32_0 : i32, i32
  }
  func.func @transform_7(%arg0: i32, %arg1: i32, %arg2: i32) -> (i32, i32) {
    %c0_i32 = arith.constant 0 : i32
    %c0_i32_0 = arith.constant 0 : i32
    %c0_i32_1 = arith.constant 0 : i32
    return %c0_i32, %c0_i32_0 : i32, i32
  }
  func.func @transform_8(%arg0: i32, %arg1: i32, %arg2: i32) -> (i32, i32) {
    %c0_i32 = arith.constant 0 : i32
    %c0_i32_0 = arith.constant 0 : i32
    %c0_i32_1 = arith.constant 0 : i32
    return %c0_i32, %c0_i32_0 : i32, i32
  }
  func.func @transform_9(%arg0: i32, %arg1: i32, %arg2: i32) -> (i32, i32) {
    %c0_i32 = arith.constant 0 : i32
    %c0_i32_0 = arith.constant 0 : i32
    %c0_i32_1 = arith.constant 0 : i32
    return %c0_i32, %c0_i32_0 : i32, i32
  }
  func.func @transform_10(%arg0: i32, %arg1: i32, %arg2: i32) -> (i32, i32) {
    %c0_i32 = arith.constant 0 : i32
    %c0_i32_0 = arith.constant 0 : i32
    %c0_i32_1 = arith.constant 0 : i32
    return %c0_i32, %c0_i32_0 : i32, i32
  }
  func.func @transform_11(%arg0: i32, %arg1: i32, %arg2: i32) -> (i32, i32, i32) {
    %c0_i32 = arith.constant 0 : i32
    %c0_i32_0 = arith.constant 0 : i32
    return %arg0, %arg1, %c0_i32 : i32, i32, i32
  }
}

</mosaic_0001>

<llo_original>
// kernel: tpu_custom_call.1
$region0: #{tpu_custom_call.1}
  #allocation0 [shape = 'u32[]', space=smem, size = 0x4, offset = 0x4, fixed_abs, tag = 'smem constant byte address 0x4 - core index']
  #allocation1 [shape = 'u32[144,128]{1,0:T(1,128)}', space=vmem, size = 0x12000, scoped, tag = 'internal scratch']
  #allocation2 [shape = 'f32[4,8,1]{2,1,0:T(8,128)}', space=vmem, size = 0x4000, scoped, tag = 'scratch operand']
  #allocation3 [shape = 'f32[4,8,1]{2,1,0:T(8,128)}', space=vmem, size = 0x4000, scoped, tag = 'scratch operand']
  #allocation4 [shape = 'f32[4,8,8]{2,1,0:T(8,128)}', space=vmem, size = 0x4000, scoped, tag = 'scratch operand']
  %s0 = inlined_call_operand.hbm [shape: f32[2,6,32], index: 0, kind: input, shape index: {}]
  %s1 = inlined_call_operand.hbm [shape: f32[2,8,32], index: 1, kind: input, shape index: {}]
  %s2 = inlined_call_operand.hbm [shape: bf16[2,4,8,8], index: 2, kind: input, shape index: {}]
  %s3 = inlined_call_operand.hbm [shape: bf16[2,4,8,8], index: 3, kind: input, shape index: {}]
  %s4 = inlined_call_operand.hbm [shape: bf16[2,4,8,8], index: 4, kind: input, shape index: {}]
  %s5 = inlined_call_operand.hbm [shape: bf16[32,32], index: 5, kind: input, shape index: {}]
  %s6 = inlined_call_operand.hbm [shape: f32[1,32], index: 6, kind: input, shape index: {}]
  %s7 = inlined_call_operand.hbm [shape: bf16[32,128], index: 7, kind: input, shape index: {}]
  %s8 = inlined_call_operand.hbm [shape: f32[1,128], index: 8, kind: input, shape index: {}]
  %s9 = inlined_call_operand.hbm [shape: bf16[128,32], index: 9, kind: input, shape index: {}]
  %s10 = inlined_call_operand.hbm [shape: f32[1,32], index: 10, kind: input, shape index: {}]
  %s11 = inlined_call_operand.hbm [shape: f32[2,8,32], index: 11, kind: output, shape index: {}]
  %s12 = sld [smem:[#allocation0]]
  $region129: #{tpu_custom_call.1} parent=0
    _
  %s14 = ssub.s32 1, %s12
  %s15 = scalar_select 0, %s14, %s12
  $region1: #{tpu_custom_call.1} parent=0
    #allocation5 [shape = 'u8[8192]{0}', space=vmem, size = 0x2000, scoped, tag = 'input window, operand 0']
    #allocation6 [shape = 's32[2]{0}', space=sflag, size = 0x8, scoped, tag = 'scoped memory for tpu_custom_call.1']
    #allocation7 [shape = 's32[2]{0}', space=sflag, size = 0x8, scoped, tag = 'scoped memory for tpu_custom_call.1']
    #allocation8 [shape = 'u8[8192]{0}', space=vmem, size = 0x2000, scoped, tag = 'input window, operand 1']
    #allocation9 [shape = 's32[2]{0}', space=sflag, size = 0x8, scoped, tag = 'scoped memory for tpu_custom_call.1']
    #allocation10 [shape = 'u8[16384]{0}', space=vmem, size = 0x4000, scoped, tag = 'input window, operand 2']
    #allocation11 [shape = 'u8[16384]{0}', space=vmem, size = 0x4000, scoped, tag = 'input window, operand 3']
    #allocation12 [shape = 's32[2]{0}', space=sflag, size = 0x8, scoped, tag = 'scoped memory for tpu_custom_call.1']
    #allocation13 [shape = 'u8[16384]{0}', space=vmem, size = 0x4000, scoped, tag = 'input window, operand 4']
    #allocation14 [shape = 'u8[8192]{0}', space=vmem, size = 0x2000, scoped, tag = 'input window, operand 5, single buffered']
    #allocation15 [shape = 's32[1]{0}', space=sflag, size = 0x4, scoped, tag = 'scoped memory for tpu_custom_call.1']
    #allocation16 [shape = 'u8[512]{0}', space=vmem, size = 0x400, scoped, tag = 'input window, operand 6, single buffered']
    #allocation17 [shape = 'u8[8192]{0}', space=vmem, size = 0x2000, scoped, tag = 'input window, operand 7, single buffered']
    #allocation18 [shape = 's32[1]{0}', space=sflag, size = 0x4, scoped, tag = 'scoped memory for tpu_custom_call.1']
    #allocation19 [shape = 'u8[512]{0}', space=vmem, size = 0x400, scoped, tag = 'input window, operand 8, single buffered']
    #allocation20 [shape = 'u8[32768]{0}', space=vmem, size = 0x8000, scoped, tag = 'input window, operand 9, single buffered']
    #allocation21 [shape = 's32[1]{0}', space=sflag, size = 0x4, scoped, tag = 'scoped memory for tpu_custom_call.1']
    #allocation22 [shape = 'u8[512]{0}', space=vmem, size = 0x400, scoped, tag = 'input window, operand 10, single buffered']
    #allocation23 [shape = 'u8[8192]{0}', space=vmem, size = 0x2000, scoped, tag = 'output window, operand 0']
    %16 = vsyncpa [#allocation6], 0
    %s17 = scalar_lea.sflag [#allocation6], 1
    %18 = vsyncpa %s17, 0
    %19 = vsyncpa [#allocation9], 0
    %s20 = scalar_lea.sflag [#allocation9], 1
    %21 = vsyncpa %s20, 0
    %22 = vsyncpa [#allocation12], 0
    %s23 = scalar_lea.sflag [#allocation12], 1
    %24 = vsyncpa %s23, 0
    %25 = vsyncpa [#allocation15], 0
    %26 = vsyncpa [#allocation18], 0
    %27 = vsyncpa [#allocation21], 0
    %28 = vsyncpa [#allocation7], 0
    %s29 = scalar_lea.sflag [#allocation7], 1
    %30 = vsyncpa %s29, 0
    loop: start=0, step=1, limit=4
    $region2: #{tpu_custom_call.1} parent=1 // loop_pre_header
      _
    $region3: #{tpu_custom_call.1} parent=1 // loop_header
      %s32 = sphi 0, %s36
      %p33 = scmp.ge.s32.totalorder %s32, 4
      %s39 = sphi 0, %s58
      %s40 = sphi 0, %s54
      %s41 = sphi 0, %s50
      %s42 = sphi 0, %s39
      %s43 = sphi 0, %s40
      %s44 = sphi 0, %s41
      %s45 = sphi 0, %s42
      %s46 = sphi 0, %s43
      %s47 = sphi 0, %s44
      %s61 = sphi 0, %s63
      %s64 = sphi 0, %s61
      %s65 = sphi 0, %s64
      %s81 = sphi 0, %s65
      %s89 = sphi 0, %s91
      %s92 = sphi 0, %s89
      %s93 = sphi 0, %s92
      %s109 = sphi 0, %s93
      %s117 = sphi 0, %s119
      %s120 = sphi 0, %s117
      %s121 = sphi 0, %s120
      %s137 = sphi 0, %s121
      %s145 = sphi 0, %s147
      %s148 = sphi 0, %s145
      %s149 = sphi 0, %s148
      %s165 = sphi 0, %s149
      %s173 = sphi 0, %s175
      %s176 = sphi 0, %s173
      %s177 = sphi 0, %s176
      %s193 = sphi 0, %s177
      %s197 = sphi 0, %s197
      %s199 = sphi 0, %s197
      %s200 = sphi 0, %s199
      %s214 = sphi 0, %s200
      %s218 = sphi 0, %s218
      %s220 = sphi 0, %s218
      %s221 = sphi 0, %s220
      %s235 = sphi 0, %s221
      %s239 = sphi 0, %s239
      %s241 = sphi 0, %s239
      %s242 = sphi 0, %s241
      %s256 = sphi 0, %s242
      %s260 = sphi 0, %s260
      %s262 = sphi 0, %s260
      %s263 = sphi 0, %s262
      %s277 = sphi 0, %s263
      %s281 = sphi 0, %s281
      %s283 = sphi 0, %s281
      %s284 = sphi 0, %s283
      %s298 = sphi 0, %s284
      %s302 = sphi 0, %s302
      %s304 = sphi 0, %s302
      %s305 = sphi 0, %s304
      %s319 = sphi 0, %s305
      %s327 = sphi 0, %s329
      %s330 = sphi 0, %s327
      %s331 = sphi 0, %s330
      %s347 = sphi 0, %s331
    $region4: #{tpu_custom_call.1} parent=1 // loop_header_branch
      %35 = sbr.rel (%p33) target = $region8
    $region5: #{tpu_custom_call.1} parent=1 // loop_body
      %s37 = ssub.s32 %s32, 1
      %s38 = ssub.s32 %s32, 2
      %s48 = sadd.s32 1, %s41
      %p49 = scmp.ge.s32.totalorder %s48, 1
      %s50 = scalar_select %p49, 0, %s48
      %s51 = sadd.s32 1, %s40
      %s52 = scalar_select %p49, %s51, %s40
      %p53 = scmp.ge.s32.totalorder %s52, 1
      %s54 = scalar_select %p53, 0, %s52
      %s55 = sadd.s32 1, %s39
      %s56 = scalar_select %p53, %s55, %s39
      %p57 = scmp.ge.s32.totalorder %s56, 2
      %s58 = scalar_select %p57, 0, %s56
      %s59 = ssub.s32 %s39, %s58
      %p60 = scmp.eq.s32.totalorder %s59, 0
      %s62 = sadd.s32 %s61, 1
      %s63 = scalar_select %p60, %s61, %s62
      %p66 = pneg %p60
      %p67 = scmp.eq.s32.totalorder %s32, 1
      %p68 = por %p66, %p67
      %p69 = scmp.ne.s32.totalorder %s61, %s64
      %p70 = scmp.eq.s32.totalorder %s32, 0
      %p71 = por %p69, %p70
      %p72 = scmp.ne.s32.totalorder %s61, %s64
      %p73 = scmp.eq.s32.totalorder %s37, 1
      %p74 = por %p72, %p73
      %p75 = scmp.ne.s32.totalorder %s64, %s65
      %p76 = scmp.eq.s32.totalorder %s37, 0
      %p77 = por %p75, %p76
      %p78 = scmp.ne.s32.totalorder %s64, %s65
      %p79 = scmp.eq.s32.totalorder %s38, 1
      %p80 = por %p78, %p79
      %p82 = scmp.ne.s32.totalorder %s65, %s81
      %p83 = scmp.eq.s32.totalorder %s38, 0
      %p84 = por %p82, %p83
      %s85 = ssub.s32 %s39, %s58
      %s86 = ssub.s32 %s40, %s54
      %s87 = sor.u32 %s85, %s86
      %p88 = scmp.eq.s32.totalorder %s87, 0
      %s90 = sadd.s32 %s89, 1
      %s91 = scalar_select %p88, %s89, %s90
      %p94 = pneg %p88
      %p95 = scmp.eq.s32.totalorder %s32, 1
      %p96 = por %p94, %p95
      %p97 = scmp.ne.s32.totalorder %s89, %s92
      %p98 = scmp.eq.s32.totalorder %s32, 0
      %p99 = por %p97, %p98
      %p100 = scmp.ne.s32.totalorder %s89, %s92
      %p101 = scmp.eq.s32.totalorder %s37, 1
      %p102 = por %p100, %p101
      %p103 = scmp.ne.s32.totalorder %s92, %s93
      %p104 = scmp.eq.s32.totalorder %s37, 0
      %p105 = por %p103, %p104
      %p106 = scmp.ne.s32.totalorder %s92, %s93
      %p107 = scmp.eq.s32.totalorder %s38, 1
      %p108 = por %p106, %p107
      %p110 = scmp.ne.s32.totalorder %s93, %s109
      %p111 = scmp.eq.s32.totalorder %s38, 0
      %p112 = por %p110, %p111
      %s113 = ssub.s32 %s39, %s58
      %s114 = ssub.s32 %s40, %s54
      %s115 = sor.u32 %s113, %s114
      %p116 = scmp.eq.s32.totalorder %s115, 0
      %s118 = sadd.s32 %s117, 1
      %s119 = scalar_select %p116, %s117, %s118
      %p122 = pneg %p116
      %p123 = scmp.eq.s32.totalorder %s32, 1
      %p124 = por %p122, %p123
      %p125 = scmp.ne.s32.totalorder %s117, %s120
      %p126 = scmp.eq.s32.totalorder %s32, 0
      %p127 = por %p125, %p126
      %p128 = scmp.ne.s32.totalorder %s117, %s120
      %p129 = scmp.eq.s32.totalorder %s37, 1
      %p130 = por %p128, %p129
      %p131 = scmp.ne.s32.totalorder %s120, %s121
      %p132 = scmp.eq.s32.totalorder %s37, 0
      %p133 = por %p131, %p132
      %p134 = scmp.ne.s32.totalorder %s120, %s121
      %p135 = scmp.eq.s32.totalorder %s38, 1
      %p136 = por %p134, %p135
      %p138 = scmp.ne.s32.totalorder %s121, %s137
      %p139 = scmp.eq.s32.totalorder %s38, 0
      %p140 = por %p138, %p139
      %s141 = ssub.s32 %s39, %s58
      %s142 = ssub.s32 %s41, %s50
      %s143 = sor.u32 %s141, %s142
      %p144 = scmp.eq.s32.totalorder %s143, 0
      %s146 = sadd.s32 %s145, 1
      %s147 = scalar_select %p144, %s145, %s146
      %p150 = pneg %p144
      %p151 = scmp.eq.s32.totalorder %s32, 1
      %p152 = por %p150, %p151
      %p153 = scmp.ne.s32.totalorder %s145, %s148
      %p154 = scmp.eq.s32.totalorder %s32, 0
      %p155 = por %p153, %p154
      %p156 = scmp.ne.s32.totalorder %s145, %s148
      %p157 = scmp.eq.s32.totalorder %s37, 1
      %p158 = por %p156, %p157
      %p159 = scmp.ne.s32.totalorder %s148, %s149
      %p160 = scmp.eq.s32.totalorder %s37, 0
      %p161 = por %p159, %p160
      %p162 = scmp.ne.s32.totalorder %s148, %s149
      %p163 = scmp.eq.s32.totalorder %s38, 1
      %p164 = por %p162, %p163
      %p166 = scmp.ne.s32.totalorder %s149, %s165
      %p167 = scmp.eq.s32.totalorder %s38, 0
      %p168 = por %p166, %p167
      %s169 = ssub.s32 %s39, %s58
      %s170 = ssub.s32 %s41, %s50
      %s171 = sor.u32 %s169, %s170
      %p172 = scmp.eq.s32.totalorder %s171, 0
      %s174 = sadd.s32 %s173, 1
      %s175 = scalar_select %p172, %s173, %s174
      %p178 = pneg %p172
      %p179 = scmp.eq.s32.totalorder %s32, 1
      %p180 = por %p178, %p179
      %p181 = scmp.ne.s32.totalorder %s173, %s176
      %p182 = scmp.eq.s32.totalorder %s32, 0
      %p183 = por %p181, %p182
      %p184 = scmp.ne.s32.totalorder %s173, %s176
      %p185 = scmp.eq.s32.totalorder %s37, 1
      %p186 = por %p184, %p185
      %p187 = scmp.ne.s32.totalorder %s176, %s177
      %p188 = scmp.eq.s32.totalorder %s37, 0
      %p189 = por %p187, %p188
      %p190 = scmp.ne.s32.totalorder %s176, %s177
      %p191 = scmp.eq.s32.totalorder %s38, 1
      %p192 = por %p190, %p191
      %p194 = scmp.ne.s32.totalorder %s177, %s193
      %p195 = scmp.eq.s32.totalorder %s38, 0
      %p196 = por %p194, %p195
      %s198 = sadd.s32 %s197, 1
      %p201 = scmp.eq.s32.totalorder %s32, 1
      %p202 = scmp.ne.s32.totalorder %s197, %s199
      %p203 = scmp.eq.s32.totalorder %s32, 0
      %p204 = por %p202, %p203
      %p205 = scmp.ne.s32.totalorder %s197, %s199
      %p206 = scmp.eq.s32.totalorder %s37, 1
      %p207 = por %p205, %p206
      %p208 = scmp.ne.s32.totalorder %s199, %s200
      %p209 = scmp.eq.s32.totalorder %s37, 0
      %p210 = por %p208, %p209
      %p211 = scmp.ne.s32.totalorder %s199, %s200
      %p212 = scmp.eq.s32.totalorder %s38, 1
      %p213 = por %p211, %p212
      %p215 = scmp.ne.s32.totalorder %s200, %s214
      %p216 = scmp.eq.s32.totalorder %s38, 0
      %p217 = por %p215, %p216
      %s219 = sadd.s32 %s218, 1
      %p222 = scmp.eq.s32.totalorder %s32, 1
      %p223 = scmp.ne.s32.totalorder %s218, %s220
      %p224 = scmp.eq.s32.totalorder %s32, 0
      %p225 = por %p223, %p224
      %p226 = scmp.ne.s32.totalorder %s218, %s220
      %p227 = scmp.eq.s32.totalorder %s37, 1
      %p228 = por %p226, %p227
      %p229 = scmp.ne.s32.totalorder %s220, %s221
      %p230 = scmp.eq.s32.totalorder %s37, 0
      %p231 = por %p229, %p230
      %p232 = scmp.ne.s32.totalorder %s220, %s221
      %p233 = scmp.eq.s32.totalorder %s38, 1
      %p234 = por %p232, %p233
      %p236 = scmp.ne.s32.totalorder %s221, %s235
      %p237 = scmp.eq.s32.totalorder %s38, 0
      %p238 = por %p236, %p237
      %s240 = sadd.s32 %s239, 1
      %p243 = scmp.eq.s32.totalorder %s32, 1
      %p244 = scmp.ne.s32.totalorder %s239, %s241
      %p245 = scmp.eq.s32.totalorder %s32, 0
      %p246 = por %p244, %p245
      %p247 = scmp.ne.s32.totalorder %s239, %s241
      %p248 = scmp.eq.s32.totalorder %s37, 1
      %p249 = por %p247, %p248
      %p250 = scmp.ne.s32.totalorder %s241, %s242
      %p251 = scmp.eq.s32.totalorder %s37, 0
      %p252 = por %p250, %p251
      %p253 = scmp.ne.s32.totalorder %s241, %s242
      %p254 = scmp.eq.s32.totalorder %s38, 1
      %p255 = por %p253, %p254
      %p257 = scmp.ne.s32.totalorder %s242, %s256
      %p258 = scmp.eq.s32.totalorder %s38, 0
      %p259 = por %p257, %p258
      %s261 = sadd.s32 %s260, 1
      %p264 = scmp.eq.s32.totalorder %s32, 1
      %p265 = scmp.ne.s32.totalorder %s260, %s262
      %p266 = scmp.eq.s32.totalorder %s32, 0
      %p267 = por %p265, %p266
      %p268 = scmp.ne.s32.totalorder %s260, %s262
      %p269 = scmp.eq.s32.totalorder %s37, 1
      %p270 = por %p268, %p269
      %p271 = scmp.ne.s32.totalorder %s262, %s263
      %p272 = scmp.eq.s32.totalorder %s37, 0
      %p273 = por %p271, %p272
      %p274 = scmp.ne.s32.totalorder %s262, %s263
      %p275 = scmp.eq.s32.totalorder %s38, 1
      %p276 = por %p274, %p275
      %p278 = scmp.ne.s32.totalorder %s263, %s277
      %p279 = scmp.eq.s32.totalorder %s38, 0
      %p280 = por %p278, %p279
      %s282 = sadd.s32 %s281, 1
      %p285 = scmp.eq.s32.totalorder %s32, 1
      %p286 = scmp.ne.s32.totalorder %s281, %s283
      %p287 = scmp.eq.s32.totalorder %s32, 0
      %p288 = por %p286, %p287
      %p289 = scmp.ne.s32.totalorder %s281, %s283
      %p290 = scmp.eq.s32.totalorder %s37, 1
      %p291 = por %p289, %p290
      %p292 = scmp.ne.s32.totalorder %s283, %s284
      %p293 = scmp.eq.s32.totalorder %s37, 0
      %p294 = por %p292, %p293
      %p295 = scmp.ne.s32.totalorder %s283, %s284
      %p296 = scmp.eq.s32.totalorder %s38, 1
      %p297 = por %p295, %p296
      %p299 = scmp.ne.s32.totalorder %s284, %s298
      %p300 = scmp.eq.s32.totalorder %s38, 0
      %p301 = por %p299, %p300
      %s303 = sadd.s32 %s302, 1
      %p306 = scmp.eq.s32.totalorder %s32, 1
      %p307 = scmp.ne.s32.totalorder %s302, %s304
      %p308 = scmp.eq.s32.totalorder %s32, 0
      %p309 = por %p307, %p308
      %p310 = scmp.ne.s32.totalorder %s302, %s304
      %p311 = scmp.eq.s32.totalorder %s37, 1
      %p312 = por %p310, %p311
      %p313 = scmp.ne.s32.totalorder %s304, %s305
      %p314 = scmp.eq.s32.totalorder %s37, 0
      %p315 = por %p313, %p314
      %p316 = scmp.ne.s32.totalorder %s304, %s305
      %p317 = scmp.eq.s32.totalorder %s38, 1
      %p318 = por %p316, %p317
      %p320 = scmp.ne.s32.totalorder %s305, %s319
      %p321 = scmp.eq.s32.totalorder %s38, 0
      %p322 = por %p320, %p321
      %s323 = ssub.s32 %s39, %s58
      %s324 = ssub.s32 %s40, %s54
      %s325 = sor.u32 %s323, %s324
      %p326 = scmp.eq.s32.totalorder %s325, 0
      %s328 = sadd.s32 %s327, 1
      %s329 = scalar_select %p326, %s327, %s328
      %p332 = pneg %p326
      %p333 = scmp.eq.s32.totalorder %s32, 1
      %p334 = por %p332, %p333
      %p335 = scmp.ne.s32.totalorder %s327, %s330
      %p336 = scmp.eq.s32.totalorder %s32, 0
      %p337 = por %p335, %p336
      %p338 = scmp.ne.s32.totalorder %s327, %s330
      %p339 = scmp.eq.s32.totalorder %s37, 1
      %p340 = por %p338, %p339
      %p341 = scmp.ne.s32.totalorder %s330, %s331
      %p342 = scmp.eq.s32.totalorder %s37, 0
      %p343 = por %p341, %p342
      %p344 = scmp.ne.s32.totalorder %s330, %s331
      %p345 = scmp.eq.s32.totalorder %s38, 1
      %p346 = por %p344, %p345
      %p348 = scmp.ne.s32.totalorder %s331, %s347
      %p349 = scmp.eq.s32.totalorder %s38, 0
      %p350 = por %p348, %p349
      %p351 = scmp.le.s32.totalorder 1, %s32
      %p352 = scmp.lt.s32.totalorder %s32, 3
      %p353 = pnand %p351, %p352
      %p354 = pneg %p353
      // Predicated region
      $region9: #{tpu_custom_call.1} parent=5 // pred_check
        _
      $region10: #{tpu_custom_call.1} parent=5 // pred_check_branch
        %356 = sbr.rel (%p353) target = $region12
      $region11: #{tpu_custom_call.1} parent=5 // pred_region
        %s357 = ssub.s32 %s32, 1
        // Predicated region
        $region13: #{tpu_custom_call.1} parent=11 // pred_check
          %p358 = pneg %p210
        $region14: #{tpu_custom_call.1} parent=11 // pred_check_branch
          %360 = sbr.rel (%p358) target = $region16
        $region15: #{tpu_custom_call.1} parent=11 // pred_region
          %s362 = ssub.s32 256, 256
          %363 = vsyncadd [#allocation15], %s362
          %s364 = sshll.u32 [#allocation14], 4
          %s365 = int_to_ptr.vmem [resolvable:$true] %s364
          %370 = dma.hbm_to_vmem [thread:$0]  %s5, 256, %s365, [#allocation15], 64, 64, 4
        $region16: #{tpu_custom_call.1} parent=11 // pred_fallthru
          _
        // Predicated region
        $region17: #{tpu_custom_call.1} parent=11 // pred_check
          %p371 = pneg %p231
        $region18: #{tpu_custom_call.1} parent=11 // pred_check_branch
          %373 = sbr.rel (%p371) target = $region20
        $region19: #{tpu_custom_call.1} parent=11 // pred_region
          %s375 = ssub.s32 16, 16
          %376 = vsyncadd [#allocation15], %s375
          %s378 = sshll.u32 [#allocation16], 4
          %s379 = int_to_ptr.vmem [resolvable:$true] %s378
          %381 = dma.hbm_to_vmem [thread:$0]  %s6, 16, %s379, [#allocation15]
        $region20: #{tpu_custom_call.1} parent=11 // pred_fallthru
          _
        // Predicated region
        $region21: #{tpu_custom_call.1} parent=11 // pred_check
          %p382 = pneg %p252
        $region22: #{tpu_custom_call.1} parent=11 // pred_check_branch
          %384 = sbr.rel (%p382) target = $region24
        $region23: #{tpu_custom_call.1} parent=11 // pred_region
          %s386 = ssub.s32 256, 256
          %387 = vsyncadd [#allocation18], %s386
          %s388 = sshll.u32 [#allocation17], 4
          %s389 = int_to_ptr.vmem [resolvable:$true] %s388
          %394 = dma.hbm_to_vmem [thread:$0]  %s7, 256, %s389, [#allocation18], 64, 64, 4
        $region24: #{tpu_custom_call.1} parent=11 // pred_fallthru
          _
        // Predicated region
        $region25: #{tpu_custom_call.1} parent=11 // pred_check
          %p395 = pneg %p273
        $region26: #{tpu_custom_call.1} parent=11 // pred_check_branch
          %397 = sbr.rel (%p395) target = $region28
        $region27: #{tpu_custom_call.1} parent=11 // pred_region
          %s399 = ssub.s32 16, 16
          %400 = vsyncadd [#allocation18], %s399
          %s402 = sshll.u32 [#allocation19], 4
          %s403 = int_to_ptr.vmem [resolvable:$true] %s402
          %405 = dma.hbm_to_vmem [thread:$0]  %s8, 16, %s403, [#allocation18]
        $region28: #{tpu_custom_call.1} parent=11 // pred_fallthru
          _
        // Predicated region
        $region29: #{tpu_custom_call.1} parent=11 // pred_check
          %p406 = pneg %p294
        $region30: #{tpu_custom_call.1} parent=11 // pred_check_branch
          %408 = sbr.rel (%p406) target = $region32
        $region31: #{tpu_custom_call.1} parent=11 // pred_region
          %s410 = ssub.s32 1024, 1024
          %411 = vsyncadd [#allocation21], %s410
          %s412 = sshll.u32 [#allocation20], 4
          %s413 = int_to_ptr.vmem [resolvable:$true] %s412
          %418 = dma.hbm_to_vmem [thread:$0]  %s9, 1024, %s413, [#allocation21], 64, 64, 4
        $region32: #{tpu_custom_call.1} parent=11 // pred_fallthru
          _
        // Predicated region
        $region33: #{tpu_custom_call.1} parent=11 // pred_check
          %p419 = pneg %p315
        $region34: #{tpu_custom_call.1} parent=11 // pred_check_branch
          %421 = sbr.rel (%p419) target = $region36
        $region35: #{tpu_custom_call.1} parent=11 // pred_region
          %s423 = ssub.s32 16, 16
          %424 = vsyncadd [#allocation21], %s423
          %s426 = sshll.u32 [#allocation22], 4
          %s427 = int_to_ptr.vmem [resolvable:$true] %s426
          %429 = dma.hbm_to_vmem [thread:$0]  %s10, 16, %s427, [#allocation21]
        $region36: #{tpu_custom_call.1} parent=11 // pred_fallthru
          _
      $region12: #{tpu_custom_call.1} parent=5 // pred_fallthru
        _
      %p430 = scmp.lt.s32.totalorder %s32, 2
      // Predicated region
      $region37: #{tpu_custom_call.1} parent=5 // pred_check
        %p431 = pneg %p430
      $region38: #{tpu_custom_call.1} parent=5 // pred_check_branch
        %433 = sbr.rel (%p431) target = $region40
      $region39: #{tpu_custom_call.1} parent=5 // pred_region
        // Predicated region
        $region41: #{tpu_custom_call.1} parent=39 // pred_check
          %p434 = pneg %p71
        $region42: #{tpu_custom_call.1} parent=39 // pred_check_branch
          %436 = sbr.rel (%p434) target = $region44
        $region43: #{tpu_custom_call.1} parent=39 // pred_region
          %s437 = sand.u32 %s61, 1
          %s438 = scalar_lea.sflag [#allocation6], %s437
          %s439 = sand.u32 %s61, 1
          %s440 = smul.addr %s439, 8
          %s441 = scalar_lea.vmem [#allocation5], %s440
          %s443 = ssub.s32 128, 128
          %444 = vsyncadd %s438, %s443
          %s445 = smul.addr %s39, 128
          %s446 = scalar_lea.hbm %s0, %s445
          %s448 = sshll.u32 %s441, 4
          %s449 = int_to_ptr.vmem [resolvable:$true] %s448
          %451 = dma.hbm_to_vmem [thread:$0]  %s446, 128, %s449, %s438
        $region44: #{tpu_custom_call.1} parent=39 // pred_fallthru
          _
        // Predicated region
        $region45: #{tpu_custom_call.1} parent=39 // pred_check
          %p452 = pneg %p99
        $region46: #{tpu_custom_call.1} parent=39 // pred_check_branch
          %454 = sbr.rel (%p452) target = $region48
        $region47: #{tpu_custom_call.1} parent=39 // pred_region
          %s455 = sand.u32 %s32, 1
          %s456 = scalar_lea.sflag [#allocation9], %s455
          %s457 = sand.u32 %s89, 1
          %s458 = smul.addr %s457, 8
          %s459 = scalar_lea.vmem [#allocation8], %s458
          %s461 = ssub.s32 128, 128
          %462 = vsyncadd %s456, %s461
          %s463 = sadd.s32 %s40, %s39
          %s464 = smul.addr %s463, 128
          %s465 = scalar_lea.hbm %s1, %s464
          %s467 = sshll.u32 %s459, 4
          %s468 = int_to_ptr.vmem [resolvable:$true] %s467
          %470 = dma.hbm_to_vmem [thread:$0]  %s465, 128, %s468, %s456
        $region48: #{tpu_custom_call.1} parent=39 // pred_fallthru
          _
        // Predicated region
        $region49: #{tpu_custom_call.1} parent=39 // pred_check
          %p471 = pneg %p127
        $region50: #{tpu_custom_call.1} parent=39 // pred_check_branch
          %473 = sbr.rel (%p471) target = $region52
        $region51: #{tpu_custom_call.1} parent=39 // pred_region
          %s474 = sand.u32 %s32, 1
          %s475 = scalar_lea.sflag [#allocation9], %s474
          %s476 = sand.u32 %s117, 1
          %s477 = smul.addr %s476, 16
          %s478 = scalar_lea.vmem [#allocation10], %s477
          %s480 = ssub.s32 256, 256
          %481 = vsyncadd %s475, %s480
          %s482 = smul.addr %s39, 4
          %s483 = sadd.s32 %s40, %s482
          %s484 = smul.addr %s483, 64
          %s485 = scalar_lea.hbm %s2, %s484
          %s486 = sshll.u32 %s478, 4
          %s487 = int_to_ptr.vmem [resolvable:$true] %s486
          %492 = dma.hbm_to_vmem [thread:$0]  %s485, 256, %s487, %s475, 64, 64, 4
        $region52: #{tpu_custom_call.1} parent=39 // pred_fallthru
          _
        // Predicated region
        $region53: #{tpu_custom_call.1} parent=39 // pred_check
          %p493 = pneg %p155
        $region54: #{tpu_custom_call.1} parent=39 // pred_check_branch
          %495 = sbr.rel (%p493) target = $region56
        $region55: #{tpu_custom_call.1} parent=39 // pred_region
          %s496 = sand.u32 %s32, 1
          %s497 = scalar_lea.sflag [#allocation12], %s496
          %s498 = sand.u32 %s145, 1
          %s499 = smul.addr %s498, 16
          %s500 = scalar_lea.vmem [#allocation11], %s499
          %s502 = ssub.s32 256, 256
          %503 = vsyncadd %s497, %s502
          %s504 = smul.addr %s39, 4
          %s505 = sadd.s32 %s41, %s504
          %s506 = smul.addr %s505, 64
          %s507 = scalar_lea.hbm %s3, %s506
          %s508 = sshll.u32 %s500, 4
          %s509 = int_to_ptr.vmem [resolvable:$true] %s508
          %514 = dma.hbm_to_vmem [thread:$0]  %s507, 256, %s509, %s497, 64, 64, 4
        $region56: #{tpu_custom_call.1} parent=39 // pred_fallthru
          _
        // Predicated region
        $region57: #{tpu_custom_call.1} parent=39 // pred_check
          %p515 = pneg %p183
        $region58: #{tpu_custom_call.1} parent=39 // pred_check_branch
          %517 = sbr.rel (%p515) target = $region60
        $region59: #{tpu_custom_call.1} parent=39 // pred_region
          %s518 = sand.u32 %s32, 1
          %s519 = scalar_lea.sflag [#allocation12], %s518
          %s520 = sand.u32 %s173, 1
          %s521 = smul.addr %s520, 16
          %s522 = scalar_lea.vmem [#allocation13], %s521
          %s524 = ssub.s32 256, 256
          %525 = vsyncadd %s519, %s524
          %s526 = smul.addr %s39, 4
          %s527 = sadd.s32 %s41, %s526
          %s528 = smul.addr %s527, 64
          %s529 = scalar_lea.hbm %s4, %s528
          %s530 = sshll.u32 %s522, 4
          %s531 = int_to_ptr.vmem [resolvable:$true] %s530
          %536 = dma.hbm_to_vmem [thread:$0]  %s529, 256, %s531, %s519, 64, 64, 4
        $region60: #{tpu_custom_call.1} parent=39 // pred_fallthru
          _
      $region40: #{tpu_custom_call.1} parent=5 // pred_fallthru
        _
      %p537 = scmp.le.s32.totalorder 1, %s32
      %p538 = scmp.lt.s32.totalorder %s32, 3
      %p539 = pnand %p537, %p538
      %p540 = pneg %p539
      // Predicated region
      $region61: #{tpu_custom_call.1} parent=5 // pred_check
        _
      $region62: #{tpu_custom_call.1} parent=5 // pred_check_branch
        %542 = sbr.rel (%p539) target = $region64
      $region63: #{tpu_custom_call.1} parent=5 // pred_region
        %s543 = ssub.s32 %s32, 1
        %s544 = sand.u32 %s64, 1
        %s545 = scalar_lea.sflag [#allocation6], %s544
        %s546 = sand.u32 %s64, 1
        %s547 = smul.addr %s546, 8
        %s548 = scalar_lea.vmem [#allocation5], %s547
        // Predicated region
        $region65: #{tpu_custom_call.1} parent=63 // pred_check
          %p549 = pneg %p77
        $region66: #{tpu_custom_call.1} parent=63 // pred_check_branch
          %551 = sbr.rel (%p549) target = $region68
        $region67: #{tpu_custom_call.1} parent=63 // pred_region
          %552 = dma.done %s545, 128
        $region68: #{tpu_custom_call.1} parent=63 // pred_fallthru
          _
        %s553 = sand.u32 %s37, 1
        %s554 = scalar_lea.sflag [#allocation9], %s553
        %s555 = sand.u32 %s92, 1
        %s556 = smul.addr %s555, 8
        %s557 = scalar_lea.vmem [#allocation8], %s556
        // Predicated region
        $region69: #{tpu_custom_call.1} parent=63 // pred_check
          %p558 = pneg %p105
        $region70: #{tpu_custom_call.1} parent=63 // pred_check_branch
          %560 = sbr.rel (%p558) target = $region72
        $region71: #{tpu_custom_call.1} parent=63 // pred_region
          %561 = dma.done %s554, 128
        $region72: #{tpu_custom_call.1} parent=63 // pred_fallthru
          _
        %s562 = sand.u32 %s37, 1
        %s563 = scalar_lea.sflag [#allocation9], %s562
        %s564 = sand.u32 %s120, 1
        %s565 = smul.addr %s564, 16
        %s566 = scalar_lea.vmem [#allocation10], %s565
        // Predicated region
        $region73: #{tpu_custom_call.1} parent=63 // pred_check
          %p567 = pneg %p133
        $region74: #{tpu_custom_call.1} parent=63 // pred_check_branch
          %569 = sbr.rel (%p567) target = $region76
        $region75: #{tpu_custom_call.1} parent=63 // pred_region
          %570 = dma.done %s563, 256
        $region76: #{tpu_custom_call.1} parent=63 // pred_fallthru
          _
        %s571 = sand.u32 %s37, 1
        %s572 = scalar_lea.sflag [#allocation12], %s571
        %s573 = sand.u32 %s148, 1
        %s574 = smul.addr %s573, 16
        %s575 = scalar_lea.vmem [#allocation11], %s574
        // Predicated region
        $region77: #{tpu_custom_call.1} parent=63 // pred_check
          %p576 = pneg %p161
        $region78: #{tpu_custom_call.1} parent=63 // pred_check_branch
          %578 = sbr.rel (%p576) target = $region80
        $region79: #{tpu_custom_call.1} parent=63 // pred_region
          %579 = dma.done %s572, 256
        $region80: #{tpu_custom_call.1} parent=63 // pred_fallthru
          _
        %s580 = sand.u32 %s37, 1
        %s581 = scalar_lea.sflag [#allocation12], %s580
        %s582 = sand.u32 %s176, 1
        %s583 = smul.addr %s582, 16
        %s584 = scalar_lea.vmem [#allocation13], %s583
        // Predicated region
        $region81: #{tpu_custom_call.1} parent=63 // pred_check
          %p585 = pneg %p189
        $region82: #{tpu_custom_call.1} parent=63 // pred_check_branch
          %587 = sbr.rel (%p585) target = $region84
        $region83: #{tpu_custom_call.1} parent=63 // pred_region
          %588 = dma.done %s581, 256
        $region84: #{tpu_custom_call.1} parent=63 // pred_fallthru
          _
        // Predicated region
        $region85: #{tpu_custom_call.1} parent=63 // pred_check
          %p589 = pneg %p210
        $region86: #{tpu_custom_call.1} parent=63 // pred_check_branch
          %591 = sbr.rel (%p589) target = $region88
        $region87: #{tpu_custom_call.1} parent=63 // pred_region
          %592 = dma.done [#allocation15], 256
        $region88: #{tpu_custom_call.1} parent=63 // pred_fallthru
          _
        // Predicated region
        $region89: #{tpu_custom_call.1} parent=63 // pred_check
          %p593 = pneg %p231
        $region90: #{tpu_custom_call.1} parent=63 // pred_check_branch
          %595 = sbr.rel (%p593) target = $region92
        $region91: #{tpu_custom_call.1} parent=63 // pred_region
          %596 = dma.done [#allocation15], 16
        $region92: #{tpu_custom_call.1} parent=63 // pred_fallthru
          _
        // Predicated region
        $region93: #{tpu_custom_call.1} parent=63 // pred_check
          %p597 = pneg %p252
        $region94: #{tpu_custom_call.1} parent=63 // pred_check_branch
          %599 = sbr.rel (%p597) target = $region96
        $region95: #{tpu_custom_call.1} parent=63 // pred_region
          %600 = dma.done [#allocation18], 256
        $region96: #{tpu_custom_call.1} parent=63 // pred_fallthru
          _
        // Predicated region
        $region97: #{tpu_custom_call.1} parent=63 // pred_check
          %p601 = pneg %p273
        $region98: #{tpu_custom_call.1} parent=63 // pred_check_branch
          %603 = sbr.rel (%p601) target = $region100
        $region99: #{tpu_custom_call.1} parent=63 // pred_region
          %604 = dma.done [#allocation18], 16
        $region100: #{tpu_custom_call.1} parent=63 // pred_fallthru
          _
        // Predicated region
        $region101: #{tpu_custom_call.1} parent=63 // pred_check
          %p605 = pneg %p294
        $region102: #{tpu_custom_call.1} parent=63 // pred_check_branch
          %607 = sbr.rel (%p605) target = $region104
        $region103: #{tpu_custom_call.1} parent=63 // pred_region
          %608 = dma.done [#allocation21], 1024
        $region104: #{tpu_custom_call.1} parent=63 // pred_fallthru
          _
        // Predicated region
        $region105: #{tpu_custom_call.1} parent=63 // pred_check
          %p609 = pneg %p315
        $region106: #{tpu_custom_call.1} parent=63 // pred_check_branch
          %611 = sbr.rel (%p609) target = $region108
        $region107: #{tpu_custom_call.1} parent=63 // pred_region
          %612 = dma.done [#allocation21], 16
        $region108: #{tpu_custom_call.1} parent=63 // pred_fallthru
          _
        %s613 = sand.u32 %s64, 1
        %s614 = scalar_lea.sflag [#allocation6], %s613
        %s615 = sand.u32 %s64, 1
        %s616 = smul.addr %s615, 8
        %s617 = scalar_lea.vmem [#allocation5], %s616
        %p618 = pneg %p77
        %p619 = pneg %p74
        %s620 = sand.u32 %s37, 1
        %s621 = scalar_lea.sflag [#allocation9], %s620
        %s622 = sand.u32 %s92, 1
        %s623 = smul.addr %s622, 8
        %s624 = scalar_lea.vmem [#allocation8], %s623
        %p625 = pneg %p105
        %p626 = pneg %p102
        %s627 = sand.u32 %s37, 1
        %s628 = scalar_lea.sflag [#allocation9], %s627
        %s629 = sand.u32 %s120, 1
        %s630 = smul.addr %s629, 16
        %s631 = scalar_lea.vmem [#allocation10], %s630
        %p632 = pneg %p133
        %p633 = pneg %p130
        %s634 = sand.u32 %s37, 1
        %s635 = scalar_lea.sflag [#allocation12], %s634
        %s636 = sand.u32 %s148, 1
        %s637 = smul.addr %s636, 16
        %s638 = scalar_lea.vmem [#allocation11], %s637
        %p639 = pneg %p161
        %p640 = pneg %p158
        %s641 = sand.u32 %s37, 1
        %s642 = scalar_lea.sflag [#allocation12], %s641
        %s643 = sand.u32 %s176, 1
        %s644 = smul.addr %s643, 16
        %s645 = scalar_lea.vmem [#allocation13], %s644
        %p646 = pneg %p189
        %p647 = pneg %p186
        %p648 = pneg %p210
        %p649 = pneg %p207
        %p650 = pneg %p231
        %p651 = pneg %p228
        %p652 = pneg %p252
        %p653 = pneg %p249
        %p654 = pneg %p273
        %p655 = pneg %p270
        %p656 = pneg %p294
        %p657 = pneg %p291
        %p658 = pneg %p315
        %p659 = pneg %p312
        %p660 = pneg %p343
        %p661 = pneg %p340
        %s662 = sand.u32 %s330, 1
        %s663 = scalar_lea.sflag [#allocation7], %s662
        %s664 = sand.u32 %s330, 1
        %s665 = smul.addr %s664, 8
        %s666 = scalar_lea.vmem [#allocation23], %s665
        %p668 = scmp.eq.s32.totalorder %s44, 0
        // Predicated region
        $region109: #{tpu_custom_call.1} parent=63 // pred_check
          %p669 = pneg %p668
        $region110: #{tpu_custom_call.1} parent=63 // pred_check_branch
          %671 = sbr.rel (%p669) target = $region112
        $region111: #{tpu_custom_call.1} parent=63 // pred_region
          %vm672 = vcmask 7168
          %673 = vst.msk [vmem:[#allocation2] sm:$0xff] %vm672, -inf
          %674 = vst.msk [vmem:[#allocation2 + $0x8] sm:$0xff] %vm672, -inf
          %675 = vst.msk [vmem:[#allocation2 + $0x10] sm:$0xff] %vm672, -inf
          %676 = vst.msk [vmem:[#allocation2 + $0x18] sm:$0xff] %vm672, -inf
          %677 = vst.msk [vmem:[#allocation3] sm:$0xff] %vm672, 0.0
          %678 = vst.msk [vmem:[#allocation3 + $0x8] sm:$0xff] %vm672, 0.0
          %679 = vst.msk [vmem:[#allocation3 + $0x10] sm:$0xff] %vm672, 0.0
          %680 = vst.msk [vmem:[#allocation3 + $0x18] sm:$0xff] %vm672, 0.0
          %vm681 = vcmask 64512
          %682 = vst.msk [vmem:[#allocation4] sm:$0xff] %vm681, 0.0
          %683 = vst.msk [vmem:[#allocation4 + $0x8] sm:$0xff] %vm681, 0.0
          %684 = vst.msk [vmem:[#allocation4 + $0x10] sm:$0xff] %vm681, 0.0
          %685 = vst.msk [vmem:[#allocation4 + $0x18] sm:$0xff] %vm681, 0.0
        $region112: #{tpu_custom_call.1} parent=63 // pred_fallthru
          _
        %v686 = vld [vmem:[%s566] sm:$0xf]
        %v687 = vld [vmem:[%s566 + $0x4] sm:$0xf]
        %v688 = vld [vmem:[%s566 + $0x8] sm:$0xf]
        %v689 = vld [vmem:[%s566 + $0xc] sm:$0xf]
        %v690 = vld [vmem:[%s575] sm:$0xf]
        %v691 = vld [vmem:[%s575 + $0x4] sm:$0xf]
        %v692 = vld [vmem:[%s575 + $0x8] sm:$0xf]
        %v693 = vld [vmem:[%s575 + $0xc] sm:$0xf]
        %v694 = vld [vmem:[%s584] sm:$0xf]
        %v695 = vld [vmem:[%s584 + $0x4] sm:$0xf]
        %v696 = vld [vmem:[%s584 + $0x8] sm:$0xf]
        %v697 = vld [vmem:[%s584 + $0xc] sm:$0xf]
        %vm698 = vcmask 64512
        %v700 = vsel %vm698, %v686, 0
        %vm702 = vcmask 1043456
        %v704 = vsel %vm702, %v690, 0
        %706 = vmatprep.subr.bf16.mxu0 0
        %707 = vmatpush1.bf16.msra.mxu0 %v704
        %708 = vmatprep.subr.bf16.mxu0 0
        %709 = vmatpush1.bf16.msra.mxu0 0
        %710 = vmatprep.subr.bf16.mxu0 0
        %711 = vmatpush1.bf16.msra.mxu0 0
        %712 = vmatprep.subr.bf16.mxu0 0
        %713 = vmatpush1.bf16.msra.mxu0 0
        %714 = vmatprep.subr.bf16.mxu0 0
        %715 = vmatpush1.bf16.msra.mxu0 0
        %716 = vmatprep.subr.bf16.mxu0 0
        %717 = vmatpush1.bf16.msra.mxu0 0
        %718 = vmatprep.subr.bf16.mxu0 0
        %719 = vmatpush1.bf16.msra.mxu0 0
        %720 = vmatprep.subr.bf16.mxu0 0
        %721 = vmatpush1.bf16.msra.mxu0 0
        %722 = vmatprep.subr.bf16.mxu0 0
        %723 = vmatpush1.bf16.msra.mxu0 0
        %724 = vmatprep.subr.bf16.mxu0 0
        %725 = vmatpush1.bf16.msra.mxu0 0
        %726 = vmatprep.subr.bf16.mxu0 0
        %727 = vmatpush1.bf16.msra.mxu0 0
        %728 = vmatprep.subr.bf16.mxu0 0
        %729 = vmatpush1.bf16.msra.mxu0 0
        %730 = vmatprep.subr.bf16.mxu0 0
        %731 = vmatpush1.bf16.msra.mxu0 0
        %732 = vmatprep.subr.bf16.mxu0 0
        %733 = vmatpush1.bf16.msra.mxu0 0
        %734 = vmatprep.subr.bf16.mxu0 0
        %735 = vmatpush1.bf16.msra.mxu0 0
        %736 = vmatprep.subr.bf16.mxu0 0
        %737 = vmatpush1.bf16.msra.mxu0 0
        %738 = vmatprep.mubr.bf16.mxu0 0
        %739 = vmatmul.mubr.bf16.gmra.mrb[0].mxu0 %v700
        %v740 = vpop.f32.mrb[0].mxu0
        %v741 = vadd.f32 0.0, %v740
        %v742 = vpop.f32.mrb[0].mxu0
        %v743 = vpop.f32.mrb[0].mxu0
        %v744 = vpop.f32.mrb[0].mxu0
        %745 = vdwg.mxu0
        %v747 = vsel %vm698, %v687, 0
        %v750 = vsel %vm702, %v691, 0
        %752 = vmatprep.subr.bf16.mxu0 0
        %753 = vmatpush1.bf16.msra.mxu0 %v750
        %754 = vmatprep.subr.bf16.mxu0 0
        %755 = vmatpush1.bf16.msra.mxu0 0
        %756 = vmatprep.subr.bf16.mxu0 0
        %757 = vmatpush1.bf16.msra.mxu0 0
        %758 = vmatprep.subr.bf16.mxu0 0
        %759 = vmatpush1.bf16.msra.mxu0 0
        %760 = vmatprep.subr.bf16.mxu0 0
        %761 = vmatpush1.bf16.msra.mxu0 0
        %762 = vmatprep.subr.bf16.mxu0 0
        %763 = vmatpush1.bf16.msra.mxu0 0
        %764 = vmatprep.subr.bf16.mxu0 0
        %765 = vmatpush1.bf16.msra.mxu0 0
        %766 = vmatprep.subr.bf16.mxu0 0
        %767 = vmatpush1.bf16.msra.mxu0 0
        %768 = vmatprep.subr.bf16.mxu0 0
        %769 = vmatpush1.bf16.msra.mxu0 0
        %770 = vmatprep.subr.bf16.mxu0 0
        %771 = vmatpush1.bf16.msra.mxu0 0
        %772 = vmatprep.subr.bf16.mxu0 0
        %773 = vmatpush1.bf16.msra.mxu0 0
        %774 = vmatprep.subr.bf16.mxu0 0
        %775 = vmatpush1.bf16.msra.mxu0 0
        %776 = vmatprep.subr.bf16.mxu0 0
        %777 = vmatpush1.bf16.msra.mxu0 0
        %778 = vmatprep.subr.bf16.mxu0 0
        %779 = vmatpush1.bf16.msra.mxu0 0
        %780 = vmatprep.subr.bf16.mxu0 0
        %781 = vmatpush1.bf16.msra.mxu0 0
        %782 = vmatprep.subr.bf16.mxu0 0
        %783 = vmatpush1.bf16.msra.mxu0 0
        %784 = vmatprep.mubr.bf16.mxu0 0
        %785 = vmatmul.mubr.bf16.gmra.mrb[0].mxu0 %v747
        %v786 = vpop.f32.mrb[0].mxu0
        %v787 = vadd.f32 0.0, %v786
        %v788 = vpop.f32.mrb[0].mxu0
        %v789 = vpop.f32.mrb[0].mxu0
        %v790 = vpop.f32.mrb[0].mxu0
        %791 = vdwg.mxu0
        %v793 = vsel %vm698, %v688, 0
        %v796 = vsel %vm702, %v692, 0
        %798 = vmatprep.subr.bf16.mxu0 0
        %799 = vmatpush1.bf16.msra.mxu0 %v796
        %800 = vmatprep.subr.bf16.mxu0 0
        %801 = vmatpush1.bf16.msra.mxu0 0
        %802 = vmatprep.subr.bf16.mxu0 0
        %803 = vmatpush1.bf16.msra.mxu0 0
        %804 = vmatprep.subr.bf16.mxu0 0
        %805 = vmatpush1.bf16.msra.mxu0 0
        %806 = vmatprep.subr.bf16.mxu0 0
        %807 = vmatpush1.bf16.msra.mxu0 0
        %808 = vmatprep.subr.bf16.mxu0 0
        %809 = vmatpush1.bf16.msra.mxu0 0
        %810 = vmatprep.subr.bf16.mxu0 0
        %811 = vmatpush1.bf16.msra.mxu0 0
        %812 = vmatprep.subr.bf16.mxu0 0
        %813 = vmatpush1.bf16.msra.mxu0 0
        %814 = vmatprep.subr.bf16.mxu0 0
        %815 = vmatpush1.bf16.msra.mxu0 0
        %816 = vmatprep.subr.bf16.mxu0 0
        %817 = vmatpush1.bf16.msra.mxu0 0
        %818 = vmatprep.subr.bf16.mxu0 0
        %819 = vmatpush1.bf16.msra.mxu0 0
        %820 = vmatprep.subr.bf16.mxu0 0
        %821 = vmatpush1.bf16.msra.mxu0 0
        %822 = vmatprep.subr.bf16.mxu0 0
        %823 = vmatpush1.bf16.msra.mxu0 0
        %824 = vmatprep.subr.bf16.mxu0 0
        %825 = vmatpush1.bf16.msra.mxu0 0
        %826 = vmatprep.subr.bf16.mxu0 0
        %827 = vmatpush1.bf16.msra.mxu0 0
        %828 = vmatprep.subr.bf16.mxu0 0
        %829 = vmatpush1.bf16.msra.mxu0 0
        %830 = vmatprep.mubr.bf16.mxu0 0
        %831 = vmatmul.mubr.bf16.gmra.mrb[0].mxu0 %v793
        %v832 = vpop.f32.mrb[0].mxu0
        %v833 = vadd.f32 0.0, %v832
        %v834 = vpop.f32.mrb[0].mxu0
        %v835 = vpop.f32.mrb[0].mxu0
        %v836 = vpop.f32.mrb[0].mxu0
        %837 = vdwg.mxu0
        %v839 = vsel %vm698, %v689, 0
        %v842 = vsel %vm702, %v693, 0
        %844 = vmatprep.subr.bf16.mxu0 0
        %845 = vmatpush1.bf16.msra.mxu0 %v842
        %846 = vmatprep.subr.bf16.mxu0 0
        %847 = vmatpush1.bf16.msra.mxu0 0
        %848 = vmatprep.subr.bf16.mxu0 0
        %849 = vmatpush1.bf16.msra.mxu0 0
        %850 = vmatprep.subr.bf16.mxu0 0
        %851 = vmatpush1.bf16.msra.mxu0 0
        %852 = vmatprep.subr.bf16.mxu0 0
        %853 = vmatpush1.bf16.msra.mxu0 0
        %854 = vmatprep.subr.bf16.mxu0 0
        %855 = vmatpush1.bf16.msra.mxu0 0
        %856 = vmatprep.subr.bf16.mxu0 0
        %857 = vmatpush1.bf16.msra.mxu0 0
        %858 = vmatprep.subr.bf16.mxu0 0
        %859 = vmatpush1.bf16.msra.mxu0 0
        %860 = vmatprep.subr.bf16.mxu0 0
        %861 = vmatpush1.bf16.msra.mxu0 0
        %862 = vmatprep.subr.bf16.mxu0 0
        %863 = vmatpush1.bf16.msra.mxu0 0
        %864 = vmatprep.subr.bf16.mxu0 0
        %865 = vmatpush1.bf16.msra.mxu0 0
        %866 = vmatprep.subr.bf16.mxu0 0
        %867 = vmatpush1.bf16.msra.mxu0 0
        %868 = vmatprep.subr.bf16.mxu0 0
        %869 = vmatpush1.bf16.msra.mxu0 0
        %870 = vmatprep.subr.bf16.mxu0 0
        %871 = vmatpush1.bf16.msra.mxu0 0
        %872 = vmatprep.subr.bf16.mxu0 0
        %873 = vmatpush1.bf16.msra.mxu0 0
        %874 = vmatprep.subr.bf16.mxu0 0
        %875 = vmatpush1.bf16.msra.mxu0 0
        %876 = vmatprep.mubr.bf16.mxu0 0
        %877 = vmatmul.mubr.bf16.gmra.mrb[0].mxu0 %v839
        %v878 = vpop.f32.mrb[0].mxu0
        %v879 = vadd.f32 0.0, %v878
        %v880 = vpop.f32.mrb[0].mxu0
        %v881 = vpop.f32.mrb[0].mxu0
        %v882 = vpop.f32.mrb[0].mxu0
        %883 = vdwg.mxu0
        %v884 = vld [vmem:[#allocation2] sm:$0xff]
        %v885 = vld [vmem:[#allocation2 + $0x8] sm:$0xff]
        %v886 = vld [vmem:[#allocation2 + $0x10] sm:$0xff]
        %v887 = vld [vmem:[#allocation2 + $0x18] sm:$0xff]
        %v888 = vsel %vm698, %v741, -inf
        %889 = vmax.xlane.f32.xlu0 %v888
        %v890 = vpop.xlane.xlu0 %889
        %v891 = vsel %vm698, %v787, -inf
        %892 = vmax.xlane.f32.xlu0 %v891
        %v893 = vpop.xlane.xlu0 %892
        %v894 = vsel %vm698, %v833, -inf
        %895 = vmax.xlane.f32.xlu0 %v894
        %v896 = vpop.xlane.xlu0 %895
        %v897 = vsel %vm698, %v879, -inf
        %898 = vmax.xlane.f32.xlu0 %v897
        %v899 = vpop.xlane.xlu0 %898
        %v900 = vmax.f32 %v884, %v890
        %v901 = vmax.f32 %v885, %v893
        %v902 = vmax.f32 %v886, %v896
        %v903 = vmax.f32 %v887, %v899
        %v904 = vsub.f32 %v884, %v900
        %v905 = vsub.f32 %v885, %v901
        %v906 = vsub.f32 %v886, %v902
        %v907 = vsub.f32 %v887, %v903
        %v908 = vmul.f32 %v904, 1.442695
        %v909 = vpow.pop %v908
        %v910 = vmul.f32 %v905, 1.442695
        %v911 = vpow.pop %v910
        %v912 = vmul.f32 %v906, 1.442695
        %v913 = vpow.pop %v912
        %v914 = vmul.f32 %v907, 1.442695
        %v915 = vpow.pop %v914
        %917 = vset.pattern.permute.xlu0 0
        %918 = vperm.xlu0 %917, %v900
        %v919 = vpop.permute.xlu0 %918
        %922 = vset.pattern.permute.xlu0 0
        %923 = vperm.xlu0 %922, %v901
        %v924 = vpop.permute.xlu0 %923
        %927 = vset.pattern.permute.xlu0 0
        %928 = vperm.xlu0 %927, %v902
        %v929 = vpop.permute.xlu0 %928
        %932 = vset.pattern.permute.xlu0 0
        %933 = vperm.xlu0 %932, %v903
        %v934 = vpop.permute.xlu0 %933
        %v936 = vsub.f32 %v741, %v919
        %v937 = vsub.f32 %v787, %v924
        %v938 = vsub.f32 %v833, %v929
        %v939 = vsub.f32 %v879, %v934
        %v940 = vpack.c.bf16 %v936, %v936
        %v941 = vpack.c.bf16 %v937, %v937
        %v942 = vpack.c.bf16 %v938, %v938
        %v943 = vpack.c.bf16 %v939, %v939
        %v945 = vmul.bf16 %v940, 1069105081
        %v946 = vpow.bf16.pop %v945
        %v948 = vmul.bf16 %v941, 1069105081
        %v949 = vpow.bf16.pop %v948
        %v951 = vmul.bf16 %v942, 1069105081
        %v952 = vpow.bf16.pop %v951
        %v954 = vmul.bf16 %v943, 1069105081
        %v955 = vpow.bf16.pop %v954
        %v956 = vld [vmem:[#allocation3] sm:$0xff]
        %v957 = vld [vmem:[#allocation3 + $0x8] sm:$0xff]
        %v958 = vld [vmem:[#allocation3 + $0x10] sm:$0xff]
        %v959 = vld [vmem:[#allocation3 + $0x18] sm:$0xff]
        %v960 = vmul.f32 %v909, %v956
        %v961 = vmul.f32 %v911, %v957
        %v962 = vmul.f32 %v913, %v958
        %v963 = vmul.f32 %v915, %v959
        %v964 = vunpack.c.l.bf16 %v946
        %v965 = vunpack.c.l.bf16 %v949
        %v966 = vunpack.c.l.bf16 %v952
        %v967 = vunpack.c.l.bf16 %v955
        %v968 = vsel %vm698, %v964, 0.0
        %969 = vadd.xlane.f32.xlu0 %v968
        %v970 = vpop.xlane.xlu0 %969
        %v971 = vsel %vm698, %v965, 0.0
        %972 = vadd.xlane.f32.xlu0 %v971
        %v973 = vpop.xlane.xlu0 %972
        %v974 = vsel %vm698, %v966, 0.0
        %975 = vadd.xlane.f32.xlu0 %v974
        %v976 = vpop.xlane.xlu0 %975
        %v977 = vsel %vm698, %v967, 0.0
        %978 = vadd.xlane.f32.xlu0 %v977
        %v979 = vpop.xlane.xlu0 %978
        %v980 = vadd.f32 %v960, %v970
        %v981 = vadd.f32 %v961, %v973
        %v982 = vadd.f32 %v962, %v976
        %v983 = vadd.f32 %v963, %v979
        %vm984 = vcmask 7168
        %985 = vst.msk [vmem:[#allocation3] sm:$0xff] %vm984, %v980
        %986 = vst.msk [vmem:[#allocation3 + $0x8] sm:$0xff] %vm984, %v981
        %987 = vst.msk [vmem:[#allocation3 + $0x10] sm:$0xff] %vm984, %v982
        %988 = vst.msk [vmem:[#allocation3 + $0x18] sm:$0xff] %vm984, %v983
        %v989 = vld [vmem:[#allocation4] sm:$0xff]
        %v990 = vld [vmem:[#allocation4 + $0x8] sm:$0xff]
        %v991 = vld [vmem:[#allocation4 + $0x10] sm:$0xff]
        %v992 = vld [vmem:[#allocation4 + $0x18] sm:$0xff]
        %994 = vset.pattern.permute.xlu0 0
        %995 = vperm.xlu0 %994, %v909
        %v996 = vpop.permute.xlu0 %995
        %999 = vset.pattern.permute.xlu0 0
        %1000 = vperm.xlu0 %999, %v911
        %v1001 = vpop.permute.xlu0 %1000
        %1004 = vset.pattern.permute.xlu0 0
        %1005 = vperm.xlu0 %1004, %v913
        %v1006 = vpop.permute.xlu0 %1005
        %1009 = vset.pattern.permute.xlu0 0
        %1010 = vperm.xlu0 %1009, %v915
        %v1011 = vpop.permute.xlu0 %1010
        %v1013 = vmul.f32 %v996, %v989
        %v1014 = vmul.f32 %v1001, %v990
        %v1015 = vmul.f32 %v1006, %v991
        %v1016 = vmul.f32 %v1011, %v992
        %v1018 = vsel %vm698, %v946, 0
        %v1021 = vsel %vm702, %v694, 0
        %1023 = vmatprep.subr.bf16.mxu0 0
        %1024 = vmatpush1.bf16.msra.mxu0 %v1021
        %1025 = vmatprep.subr.bf16.mxu0 0
        %1026 = vmatpush1.bf16.msra.mxu0 0
        %1027 = vmatprep.subr.bf16.mxu0 0
        %1028 = vmatpush1.bf16.msra.mxu0 0
        %1029 = vmatprep.subr.bf16.mxu0 0
        %1030 = vmatpush1.bf16.msra.mxu0 0
        %1031 = vmatprep.subr.bf16.mxu0 0
        %1032 = vmatpush1.bf16.msra.mxu0 0
        %1033 = vmatprep.subr.bf16.mxu0 0
        %1034 = vmatpush1.bf16.msra.mxu0 0
        %1035 = vmatprep.subr.bf16.mxu0 0
        %1036 = vmatpush1.bf16.msra.mxu0 0
        %1037 = vmatprep.subr.bf16.mxu0 0
        %1038 = vmatpush1.bf16.msra.mxu0 0
        %1039 = vmatprep.subr.bf16.mxu0 0
        %1040 = vmatpush1.bf16.msra.mxu0 0
        %1041 = vmatprep.subr.bf16.mxu0 0
        %1042 = vmatpush1.bf16.msra.mxu0 0
        %1043 = vmatprep.subr.bf16.mxu0 0
        %1044 = vmatpush1.bf16.msra.mxu0 0
        %1045 = vmatprep.subr.bf16.mxu0 0
        %1046 = vmatpush1.bf16.msra.mxu0 0
        %1047 = vmatprep.subr.bf16.mxu0 0
        %1048 = vmatpush1.bf16.msra.mxu0 0
        %1049 = vmatprep.subr.bf16.mxu0 0
        %1050 = vmatpush1.bf16.msra.mxu0 0
        %1051 = vmatprep.subr.bf16.mxu0 0
        %1052 = vmatpush1.bf16.msra.mxu0 0
        %1053 = vmatprep.subr.bf16.mxu0 0
        %1054 = vmatpush1.bf16.msra.mxu0 0
        %1055 = vmatprep.mubr.bf16.mxu0 0
        %1056 = vmatmul.mubr.bf16.gmra.mrb[0].mxu0 %v1018
        %v1057 = vpop.f32.mrb[0].mxu0
        %v1058 = vadd.f32 0.0, %v1057
        %v1059 = vpop.f32.mrb[0].mxu0
        %v1060 = vpop.f32.mrb[0].mxu0
        %v1061 = vpop.f32.mrb[0].mxu0
        %1062 = vdwg.mxu0
        %v1064 = vsel %vm698, %v949, 0
        %v1067 = vsel %vm702, %v695, 0
        %1069 = vmatprep.subr.bf16.mxu0 0
        %1070 = vmatpush1.bf16.msra.mxu0 %v1067
        %1071 = vmatprep.subr.bf16.mxu0 0
        %1072 = vmatpush1.bf16.msra.mxu0 0
        %1073 = vmatprep.subr.bf16.mxu0 0
        %1074 = vmatpush1.bf16.msra.mxu0 0
        %1075 = vmatprep.subr.bf16.mxu0 0
        %1076 = vmatpush1.bf16.msra.mxu0 0
        %1077 = vmatprep.subr.bf16.mxu0 0
        %1078 = vmatpush1.bf16.msra.mxu0 0
        %1079 = vmatprep.subr.bf16.mxu0 0
        %1080 = vmatpush1.bf16.msra.mxu0 0
        %1081 = vmatprep.subr.bf16.mxu0 0
        %1082 = vmatpush1.bf16.msra.mxu0 0
        %1083 = vmatprep.subr.bf16.mxu0 0
        %1084 = vmatpush1.bf16.msra.mxu0 0
        %1085 = vmatprep.subr.bf16.mxu0 0
        %1086 = vmatpush1.bf16.msra.mxu0 0
        %1087 = vmatprep.subr.bf16.mxu0 0
        %1088 = vmatpush1.bf16.msra.mxu0 0
        %1089 = vmatprep.subr.bf16.mxu0 0
        %1090 = vmatpush1.bf16.msra.mxu0 0
        %1091 = vmatprep.subr.bf16.mxu0 0
        %1092 = vmatpush1.bf16.msra.mxu0 0
        %1093 = vmatprep.subr.bf16.mxu0 0
        %1094 = vmatpush1.bf16.msra.mxu0 0
        %1095 = vmatprep.subr.bf16.mxu0 0
        %1096 = vmatpush1.bf16.msra.mxu0 0
        %1097 = vmatprep.subr.bf16.mxu0 0
        %1098 = vmatpush1.bf16.msra.mxu0 0
        %1099 = vmatprep.subr.bf16.mxu0 0
        %1100 = vmatpush1.bf16.msra.mxu0 0
        %1101 = vmatprep.mubr.bf16.mxu0 0
        %1102 = vmatmul.mubr.bf16.gmra.mrb[0].mxu0 %v1064
        %v1103 = vpop.f32.mrb[0].mxu0
        %v1104 = vadd.f32 0.0, %v1103
        %v1105 = vpop.f32.mrb[0].mxu0
        %v1106 = vpop.f32.mrb[0].mxu0
        %v1107 = vpop.f32.mrb[0].mxu0
        %1108 = vdwg.mxu0
        %v1110 = vsel %vm698, %v952, 0
        %v1113 = vsel %vm702, %v696, 0
        %1115 = vmatprep.subr.bf16.mxu0 0
        %1116 = vmatpush1.bf16.msra.mxu0 %v1113
        %1117 = vmatprep.subr.bf16.mxu0 0
        %1118 = vmatpush1.bf16.msra.mxu0 0
        %1119 = vmatprep.subr.bf16.mxu0 0
        %1120 = vmatpush1.bf16.msra.mxu0 0
        %1121 = vmatprep.subr.bf16.mxu0 0
        %1122 = vmatpush1.bf16.msra.mxu0 0
        %1123 = vmatprep.subr.bf16.mxu0 0
        %1124 = vmatpush1.bf16.msra.mxu0 0
        %1125 = vmatprep.subr.bf16.mxu0 0
        %1126 = vmatpush1.bf16.msra.mxu0 0
        %1127 = vmatprep.subr.bf16.mxu0 0
        %1128 = vmatpush1.bf16.msra.mxu0 0
        %1129 = vmatprep.subr.bf16.mxu0 0
        %1130 = vmatpush1.bf16.msra.mxu0 0
        %1131 = vmatprep.subr.bf16.mxu0 0
        %1132 = vmatpush1.bf16.msra.mxu0 0
        %1133 = vmatprep.subr.bf16.mxu0 0
        %1134 = vmatpush1.bf16.msra.mxu0 0
        %1135 = vmatprep.subr.bf16.mxu0 0
        %1136 = vmatpush1.bf16.msra.mxu0 0
        %1137 = vmatprep.subr.bf16.mxu0 0
        %1138 = vmatpush1.bf16.msra.mxu0 0
        %1139 = vmatprep.subr.bf16.mxu0 0
        %1140 = vmatpush1.bf16.msra.mxu0 0
        %1141 = vmatprep.subr.bf16.mxu0 0
        %1142 = vmatpush1.bf16.msra.mxu0 0
        %1143 = vmatprep.subr.bf16.mxu0 0
        %1144 = vmatpush1.bf16.msra.mxu0 0
        %1145 = vmatprep.subr.bf16.mxu0 0
        %1146 = vmatpush1.bf16.msra.mxu0 0
        %1147 = vmatprep.mubr.bf16.mxu0 0
        %1148 = vmatmul.mubr.bf16.gmra.mrb[0].mxu0 %v1110
        %v1149 = vpop.f32.mrb[0].mxu0
        %v1150 = vadd.f32 0.0, %v1149
        %v1151 = vpop.f32.mrb[0].mxu0
        %v1152 = vpop.f32.mrb[0].mxu0
        %v1153 = vpop.f32.mrb[0].mxu0
        %1154 = vdwg.mxu0
        %v1156 = vsel %vm698, %v955, 0
        %v1159 = vsel %vm702, %v697, 0
        %1161 = vmatprep.subr.bf16.mxu0 0
        %1162 = vmatpush1.bf16.msra.mxu0 %v1159
        %1163 = vmatprep.subr.bf16.mxu0 0
        %1164 = vmatpush1.bf16.msra.mxu0 0
        %1165 = vmatprep.subr.bf16.mxu0 0
        %1166 = vmatpush1.bf16.msra.mxu0 0
        %1167 = vmatprep.subr.bf16.mxu0 0
        %1168 = vmatpush1.bf16.msra.mxu0 0
        %1169 = vmatprep.subr.bf16.mxu0 0
        %1170 = vmatpush1.bf16.msra.mxu0 0
        %1171 = vmatprep.subr.bf16.mxu0 0
        %1172 = vmatpush1.bf16.msra.mxu0 0
        %1173 = vmatprep.subr.bf16.mxu0 0
        %1174 = vmatpush1.bf16.msra.mxu0 0
        %1175 = vmatprep.subr.bf16.mxu0 0
        %1176 = vmatpush1.bf16.msra.mxu0 0
        %1177 = vmatprep.subr.bf16.mxu0 0
        %1178 = vmatpush1.bf16.msra.mxu0 0
        %1179 = vmatprep.subr.bf16.mxu0 0
        %1180 = vmatpush1.bf16.msra.mxu0 0
        %1181 = vmatprep.subr.bf16.mxu0 0
        %1182 = vmatpush1.bf16.msra.mxu0 0
        %1183 = vmatprep.subr.bf16.mxu0 0
        %1184 = vmatpush1.bf16.msra.mxu0 0
        %1185 = vmatprep.subr.bf16.mxu0 0
        %1186 = vmatpush1.bf16.msra.mxu0 0
        %1187 = vmatprep.subr.bf16.mxu0 0
        %1188 = vmatpush1.bf16.msra.mxu0 0
        %1189 = vmatprep.subr.bf16.mxu0 0
        %1190 = vmatpush1.bf16.msra.mxu0 0
        %1191 = vmatprep.subr.bf16.mxu0 0
        %1192 = vmatpush1.bf16.msra.mxu0 0
        %1193 = vmatprep.mubr.bf16.mxu0 0
        %1194 = vmatmul.mubr.bf16.gmra.mrb[0].mxu0 %v1156
        %v1195 = vpop.f32.mrb[0].mxu0
        %v1196 = vadd.f32 0.0, %v1195
        %v1197 = vpop.f32.mrb[0].mxu0
        %v1198 = vpop.f32.mrb[0].mxu0
        %v1199 = vpop.f32.mrb[0].mxu0
        %1200 = vdwg.mxu0
        %v1201 = vadd.f32 %v1013, %v1058
        %v1202 = vadd.f32 %v1014, %v1104
        %v1203 = vadd.f32 %v1015, %v1150
        %v1204 = vadd.f32 %v1016, %v1196
        %1205 = vst.msk [vmem:[#allocation4] sm:$0xff] %vm698, %v1201
        %1206 = vst.msk [vmem:[#allocation4 + $0x8] sm:$0xff] %vm698, %v1202
        %1207 = vst.msk [vmem:[#allocation4 + $0x10] sm:$0xff] %vm698, %v1203
        %1208 = vst.msk [vmem:[#allocation4 + $0x18] sm:$0xff] %vm698, %v1204
        %1209 = vst.msk [vmem:[#allocation2] sm:$0xff] %vm984, %v900
        %1210 = vst.msk [vmem:[#allocation2 + $0x8] sm:$0xff] %vm984, %v901
        %1211 = vst.msk [vmem:[#allocation2 + $0x10] sm:$0xff] %vm984, %v902
        %1212 = vst.msk [vmem:[#allocation2 + $0x18] sm:$0xff] %vm984, %v903
        // Predicated region
        $region113: #{tpu_custom_call.1} parent=63 // pred_check
          %p1213 = pneg %p668
        $region114: #{tpu_custom_call.1} parent=63 // pred_check_branch
          %1215 = sbr.rel (%p1213) target = $region116
        $region115: #{tpu_custom_call.1} parent=63 // pred_region
          %v1216 = vld [vmem:[%s548] sm:$0x3f]
          %v1217 = vld [vmem:[#allocation4] sm:$0xff]
          %v1218 = vld [vmem:[#allocation3] sm:$0xff]
          %v1219 = vrcp.pop %v1218
          %1221 = vset.pattern.permute.xlu0 0
          %1222 = vperm.xlu0 %1221, %v1219
          %v1223 = vpop.permute.xlu0 %1222
          %v1225 = vmul.f32 %v1217, %v1223
          %s1226 = scalar_lea.vmem [#allocation4], 8
          %v1227 = vld [vmem:[%s1226] sm:$0xff]
          %s1228 = scalar_lea.vmem [#allocation3], 8
          %v1229 = vld [vmem:[%s1228] sm:$0xff]
          %v1230 = vrcp.pop %v1229
          %1232 = vset.pattern.permute.xlu0 0
          %1233 = vperm.xlu0 %1232, %v1230
          %v1234 = vpop.permute.xlu0 %1233
          %v1236 = vmul.f32 %v1227, %v1234
          %s1237 = scalar_lea.vmem [#allocation4], 16
          %v1238 = vld [vmem:[%s1237] sm:$0xff]
          %s1239 = scalar_lea.vmem [#allocation3], 16
          %v1240 = vld [vmem:[%s1239] sm:$0xff]
          %v1241 = vrcp.pop %v1240
          %1243 = vset.pattern.permute.xlu0 0
          %1244 = vperm.xlu0 %1243, %v1241
          %v1245 = vpop.permute.xlu0 %1244
          %v1247 = vmul.f32 %v1238, %v1245
          %s1248 = scalar_lea.vmem [#allocation4], 24
          %v1249 = vld [vmem:[%s1248] sm:$0xff]
          %s1250 = scalar_lea.vmem [#allocation3], 24
          %v1251 = vld [vmem:[%s1250] sm:$0xff]
          %v1252 = vrcp.pop %v1251
          %1254 = vset.pattern.permute.xlu0 0
          %1255 = vperm.xlu0 %1254, %v1252
          %v1256 = vpop.permute.xlu0 %1255
          %v1258 = vmul.f32 %v1249, %v1256
          %1260 = vrot.lane.b32.xlu0 %v1236, 8
          %v1261 = vpop.permute.xlu0 %1260
          %1264 = vrot.lane.b32.xlu0 %v1247, 16
          %v1265 = vpop.permute.xlu0 %1264
          %1268 = vrot.lane.b32.xlu0 %v1258, 24
          %v1269 = vpop.permute.xlu0 %1268
          %v1271 = vsel %vm698, %v1225, %v1261
          %vm1272 = vcmask 130048
          %v1273 = vsel %vm1272, %v1271, %v1265
          %vm1274 = vcmask 195584
          %v1275 = vsel %vm1274, %v1273, %v1269
          %v1276 = vpack.c.bf16 %v1275, %v1275
          %v1277 = vld [vmem:[#allocation14] sm:$0xf]
          %v1278 = vld [vmem:[#allocation14 + $0x4] sm:$0xf]
          %v1279 = vld [vmem:[#allocation14 + $0x8] sm:$0xf]
          %v1280 = vld [vmem:[#allocation14 + $0xc] sm:$0xf]
          %v1281 = vld [vmem:[#allocation16] sm:$0x1]
          %v1283 = vlaneseq
          %v1284 = vshrl.u32 %v1283, 7
          %v1285 = vsub.s32 0, %v1284
          %v1286 = vrot.slane %v1281, %v1285
          %v1292 = vunpack.c.l.b16 %v1277
          %v1293 = vunpack.c.l.b16 %v1278
          %v1294 = vunpack.c.l.b16 %v1279
          %v1295 = vunpack.c.l.b16 %v1280
          %v1296 = vpack.c.b16 %v1293, %v1292
          %v1297 = vpack.c.b16 %v1295, %v1294
          %vm1300 = vcmask 261120
          %v1302 = vsel %vm1300, %v1276, 0
          %1304 = vmatprep.subr.bf16.mxu0 0
          %1305 = vmatpush1.bf16.msra.mxu0 %v1296
          %1306 = vmatprep.subr.bf16.mxu0 0
          %1307 = vmatpush1.bf16.msra.mxu0 %v1297
          %1308 = vmatprep.subr.bf16.mxu0 0
          %1309 = vmatpush1.bf16.msra.mxu0 0
          %1310 = vmatprep.subr.bf16.mxu0 0
          %1311 = vmatpush1.bf16.msra.mxu0 0
          %1312 = vmatprep.subr.bf16.mxu0 0
          %1313 = vmatpush1.bf16.msra.mxu0 0
          %1314 = vmatprep.subr.bf16.mxu0 0
          %1315 = vmatpush1.bf16.msra.mxu0 0
          %1316 = vmatprep.subr.bf16.mxu0 0
          %1317 = vmatpush1.bf16.msra.mxu0 0
          %1318 = vmatprep.subr.bf16.mxu0 0
          %1319 = vmatpush1.bf16.msra.mxu0 0
          %1320 = vmatprep.subr.bf16.mxu0 0
          %1321 = vmatpush1.bf16.msra.mxu0 0
          %1322 = vmatprep.subr.bf16.mxu0 0
          %1323 = vmatpush1.bf16.msra.mxu0 0
          %1324 = vmatprep.subr.bf16.mxu0 0
          %1325 = vmatpush1.bf16.msra.mxu0 0
          %1326 = vmatprep.subr.bf16.mxu0 0
          %1327 = vmatpush1.bf16.msra.mxu0 0
          %1328 = vmatprep.subr.bf16.mxu0 0
          %1329 = vmatpush1.bf16.msra.mxu0 0
          %1330 = vmatprep.subr.bf16.mxu0 0
          %1331 = vmatpush1.bf16.msra.mxu0 0
          %1332 = vmatprep.subr.bf16.mxu0 0
          %1333 = vmatpush1.bf16.msra.mxu0 0
          %1334 = vmatprep.subr.bf16.mxu0 0
          %1335 = vmatpush1.bf16.msra.mxu0 0
          %1336 = vmatprep.mubr.bf16.mxu0 0
          %1337 = vmatmul.mubr.bf16.gmra.mrb[0].mxu0 %v1302
          %v1338 = vpop.f32.mrb[0].mxu0
          %v1339 = vadd.f32 %v1286, %v1338
          %v1340 = vpop.f32.mrb[0].mxu0
          %v1341 = vpop.f32.mrb[0].mxu0
          %v1342 = vpop.f32.mrb[0].mxu0
          %1343 = vdwg.mxu0
          %v1344 = vld [vmem:[%s557] sm:$0xff]
          %v1345 = vlaneseq
          %v1346 = vshrl.u32 %v1345, 7
          %v1347 = vsub.s32 2, %v1346
          %v1348 = vrot.slane %v1216, %v1347
          %v1349 = vmul.f32 %v1348, %v1339
          %v1350 = vadd.f32 %v1344, %v1349
          %v1351 = vsel %vm1300, %v1350, 0.0
          %1352 = vadd.xlane.f32.xlu0 %v1351
          %v1353 = vpop.xlane.xlu0 %1352
          %v1354 = vrcp.pop 32.0
          %v1355 = vmul.f32 %v1353, %v1354
          %v1356 = vsub.f32 %v1350, %v1355
          %v1357 = vmul.f32 %v1356, %v1356
          %v1358 = vsel %vm1300, %v1357, 0.0
          %1359 = vadd.xlane.f32.xlu0 %v1358
          %v1360 = vpop.xlane.xlu0 %1359
          %v1361 = vmul.f32 %v1360, %v1354
          %v1362 = vadd.f32 %v1361, 1e-06
          %v1363 = vrsqrt.pop %v1362
          %v1364 = vmul.f32 %v1356, %v1363
          %v1365 = vadd.f32 %v1216, 1.0
          %v1366 = vlaneseq
          %v1367 = vshrl.u32 %v1366, 7
          %v1368 = vsub.s32 4, %v1367
          %v1369 = vrot.slane %v1365, %v1368
          %v1370 = vmul.f32 %v1364, %v1369
          %v1371 = vlaneseq
          %v1372 = vshrl.u32 %v1371, 7
          %v1373 = vsub.s32 3, %v1372
          %v1374 = vrot.slane %v1216, %v1373
          %v1375 = vadd.f32 %v1370, %v1374
          %v1376 = vpack.c.bf16 %v1375, %v1375
          %v1377 = vld [vmem:[#allocation17] sm:$0xf]
          %v1378 = vld [vmem:[#allocation17 + $0x4] sm:$0xf]
          %v1379 = vld [vmem:[#allocation17 + $0x8] sm:$0xf]
          %v1380 = vld [vmem:[#allocation17 + $0xc] sm:$0xf]
          %v1381 = vld [vmem:[#allocation19] sm:$0x1]
          %v1383 = vlaneseq
          %v1384 = vshrl.u32 %v1383, 7
          %v1385 = vsub.s32 0, %v1384
          %v1386 = vrot.slane %v1381, %v1385
          %v1392 = vunpack.c.l.b16 %v1377
          %v1393 = vunpack.c.l.b16 %v1378
          %v1394 = vunpack.c.l.b16 %v1379
          %v1395 = vunpack.c.l.b16 %v1380
          %v1396 = vpack.c.b16 %v1393, %v1392
          %v1397 = vpack.c.b16 %v1395, %v1394
          %v1401 = vsel %vm1300, %v1376, 0
          %1403 = vmatprep.subr.bf16.mxu0 0
          %1404 = vmatpush1.bf16.msra.mxu0 %v1396
          %1405 = vmatprep.subr.bf16.mxu0 0
          %1406 = vmatpush1.bf16.msra.mxu0 %v1397
          %1407 = vmatprep.subr.bf16.mxu0 0
          %1408 = vmatpush1.bf16.msra.mxu0 0
          %1409 = vmatprep.subr.bf16.mxu0 0
          %1410 = vmatpush1.bf16.msra.mxu0 0
          %1411 = vmatprep.subr.bf16.mxu0 0
          %1412 = vmatpush1.bf16.msra.mxu0 0
          %1413 = vmatprep.subr.bf16.mxu0 0
          %1414 = vmatpush1.bf16.msra.mxu0 0
          %1415 = vmatprep.subr.bf16.mxu0 0
          %1416 = vmatpush1.bf16.msra.mxu0 0
          %1417 = vmatprep.subr.bf16.mxu0 0
          %1418 = vmatpush1.bf16.msra.mxu0 0
          %1419 = vmatprep.subr.bf16.mxu0 0
          %1420 = vmatpush1.bf16.msra.mxu0 0
          %1421 = vmatprep.subr.bf16.mxu0 0
          %1422 = vmatpush1.bf16.msra.mxu0 0
          %1423 = vmatprep.subr.bf16.mxu0 0
          %1424 = vmatpush1.bf16.msra.mxu0 0
          %1425 = vmatprep.subr.bf16.mxu0 0
          %1426 = vmatpush1.bf16.msra.mxu0 0
          %1427 = vmatprep.subr.bf16.mxu0 0
          %1428 = vmatpush1.bf16.msra.mxu0 0
          %1429 = vmatprep.subr.bf16.mxu0 0
          %1430 = vmatpush1.bf16.msra.mxu0 0
          %1431 = vmatprep.subr.bf16.mxu0 0
          %1432 = vmatpush1.bf16.msra.mxu0 0
          %1433 = vmatprep.subr.bf16.mxu0 0
          %1434 = vmatpush1.bf16.msra.mxu0 0
          %1435 = vmatprep.mubr.bf16.mxu0 0
          %1436 = vmatmul.mubr.bf16.gmra.mrb[0].mxu0 %v1401
          %v1437 = vpop.f32.mrb[0].mxu0
          %v1438 = vadd.f32 %v1386, %v1437
          %v1439 = vpop.f32.mrb[0].mxu0
          %v1440 = vpop.f32.mrb[0].mxu0
          %v1441 = vpop.f32.mrb[0].mxu0
          %1442 = vdwg.mxu0
          %v1443 = vmul.f32 %v1438, 0.5
          %v1444 = vmul.f32 %v1438, %v1438
          %v1445 = vmul.f32 %v1438, %v1444
          %v1446 = vmul.f32 %v1445, 0.044715
          %v1447 = vadd.f32 %v1438, %v1446
          %v1448 = vmul.f32 %v1447, 0.7978846
          %v1449 = vtanh.pop %v1448
          %v1450 = vadd.f32 %v1449, 1.0
          %v1451 = vmul.f32 %v1443, %v1450
          %v1452 = vpack.c.bf16 %v1451, %v1451
          %v1453 = vld [vmem:[#allocation20] sm:$0xf]
          %v1454 = vld [vmem:[#allocation20 + $0x4] sm:$0xf]
          %v1455 = vld [vmem:[#allocation20 + $0x8] sm:$0xf]
          %v1456 = vld [vmem:[#allocation20 + $0xc] sm:$0xf]
          %v1457 = vld [vmem:[#allocation20 + $0x10] sm:$0xf]
          %v1458 = vld [vmem:[#allocation20 + $0x14] sm:$0xf]
          %v1459 = vld [vmem:[#allocation20 + $0x18] sm:$0xf]
          %v1460 = vld [vmem:[#allocation20 + $0x1c] sm:$0xf]
          %v1461 = vld [vmem:[#allocation20 + $0x20] sm:$0xf]
          %v1462 = vld [vmem:[#allocation20 + $0x24] sm:$0xf]
          %v1463 = vld [vmem:[#allocation20 + $0x28] sm:$0xf]
          %v1464 = vld [vmem:[#allocation20 + $0x2c] sm:$0xf]
          %v1465 = vld [vmem:[#allocation20 + $0x30] sm:$0xf]
          %v1466 = vld [vmem:[#allocation20 + $0x34] sm:$0xf]
          %v1467 = vld [vmem:[#allocation20 + $0x38] sm:$0xf]
          %v1468 = vld [vmem:[#allocation20 + $0x3c] sm:$0xf]
          %v1469 = vld [vmem:[#allocation22] sm:$0x1]
          %v1471 = vlaneseq
          %v1472 = vshrl.u32 %v1471, 7
          %v1473 = vsub.s32 0, %v1472
          %v1474 = vrot.slane %v1469, %v1473
          %v1492 = vunpack.c.l.b16 %v1453
          %v1493 = vunpack.c.l.b16 %v1454
          %v1494 = vunpack.c.l.b16 %v1455
          %v1495 = vunpack.c.l.b16 %v1456
          %v1496 = vunpack.c.l.b16 %v1457
          %v1497 = vunpack.c.l.b16 %v1458
          %v1498 = vunpack.c.l.b16 %v1459
          %v1499 = vunpack.c.l.b16 %v1460
          %v1500 = vunpack.c.l.b16 %v1461
          %v1501 = vunpack.c.l.b16 %v1462
          %v1502 = vunpack.c.l.b16 %v1463
          %v1503 = vunpack.c.l.b16 %v1464
          %v1504 = vunpack.c.l.b16 %v1465
          %v1505 = vunpack.c.l.b16 %v1466
          %v1506 = vunpack.c.l.b16 %v1467
          %v1507 = vunpack.c.l.b16 %v1468
          %v1508 = vpack.c.b16 %v1493, %v1492
          %v1509 = vpack.c.b16 %v1495, %v1494
          %v1510 = vpack.c.b16 %v1497, %v1496
          %v1511 = vpack.c.b16 %v1499, %v1498
          %v1512 = vpack.c.b16 %v1501, %v1500
          %v1513 = vpack.c.b16 %v1503, %v1502
          %v1514 = vpack.c.b16 %v1505, %v1504
          %v1515 = vpack.c.b16 %v1507, %v1506
          %1524 = vmatprep.subr.bf16.mxu0 0
          %1525 = vmatpush1.bf16.msra.mxu0 %v1508
          %1526 = vmatprep.subr.bf16.mxu0 0
          %1527 = vmatpush1.bf16.msra.mxu0 %v1509
          %1528 = vmatprep.subr.bf16.mxu0 0
          %1529 = vmatpush1.bf16.msra.mxu0 %v1510
          %1530 = vmatprep.subr.bf16.mxu0 0
          %1531 = vmatpush1.bf16.msra.mxu0 %v1511
          %1532 = vmatprep.subr.bf16.mxu0 0
          %1533 = vmatpush1.bf16.msra.mxu0 %v1512
          %1534 = vmatprep.subr.bf16.mxu0 0
          %1535 = vmatpush1.bf16.msra.mxu0 %v1513
          %1536 = vmatprep.subr.bf16.mxu0 0
          %1537 = vmatpush1.bf16.msra.mxu0 %v1514
          %1538 = vmatprep.subr.bf16.mxu0 0
          %1539 = vmatpush1.bf16.msra.mxu0 %v1515
          %1540 = vmatprep.subr.bf16.mxu0 0
          %1541 = vmatpush1.bf16.msra.mxu0 0
          %1542 = vmatprep.subr.bf16.mxu0 0
          %1543 = vmatpush1.bf16.msra.mxu0 0
          %1544 = vmatprep.subr.bf16.mxu0 0
          %1545 = vmatpush1.bf16.msra.mxu0 0
          %1546 = vmatprep.subr.bf16.mxu0 0
          %1547 = vmatpush1.bf16.msra.mxu0 0
          %1548 = vmatprep.subr.bf16.mxu0 0
          %1549 = vmatpush1.bf16.msra.mxu0 0
          %1550 = vmatprep.subr.bf16.mxu0 0
          %1551 = vmatpush1.bf16.msra.mxu0 0
          %1552 = vmatprep.subr.bf16.mxu0 0
          %1553 = vmatpush1.bf16.msra.mxu0 0
          %1554 = vmatprep.subr.bf16.mxu0 0
          %1555 = vmatpush1.bf16.msra.mxu0 0
          %1556 = vmatprep.mubr.bf16.mxu0 0
          %1557 = vmatmul.mubr.bf16.gmra.mrb[0].mxu0 %v1452
          %v1558 = vpop.f32.mrb[0].mxu0
          %v1559 = vadd.f32 %v1474, %v1558
          %v1560 = vpop.f32.mrb[0].mxu0
          %v1561 = vpop.f32.mrb[0].mxu0
          %v1562 = vpop.f32.mrb[0].mxu0
          %1563 = vdwg.mxu0
          %v1564 = vlaneseq
          %v1565 = vshrl.u32 %v1564, 7
          %v1566 = vsub.s32 5, %v1565
          %v1567 = vrot.slane %v1216, %v1566
          %v1568 = vmul.f32 %v1567, %v1559
          %v1569 = vadd.f32 %v1350, %v1568
          %1570 = vst.msk [vmem:[%s666] sm:$0xff] %vm1300, %v1569
        $region116: #{tpu_custom_call.1} parent=63 // pred_fallthru
          _
        %s1571 = sand.u32 %s330, 1
        %s1572 = scalar_lea.sflag [#allocation7], %s1571
        %s1573 = sand.u32 %s330, 1
        %s1574 = smul.addr %s1573, 8
        %s1575 = scalar_lea.vmem [#allocation23], %s1574
        // Predicated region
        $region117: #{tpu_custom_call.1} parent=63 // pred_check
          %p1576 = pneg %p340
        $region118: #{tpu_custom_call.1} parent=63 // pred_check_branch
          %1578 = sbr.rel (%p1576) target = $region120
        $region119: #{tpu_custom_call.1} parent=63 // pred_region
          %s1580 = ssub.s32 128, 128
          %1581 = vsyncadd %s1572, %s1580
          %s1582 = sadd.s32 %s43, %s42
          %s1583 = smul.addr %s1582, 128
          %s1584 = scalar_lea.hbm %s11, %s1583
          %s1586 = sshll.u32 %s1575, 4
          %s1587 = int_to_ptr.vmem [resolvable:$true] %s1586
          %1589 = dma.vmem_to_hbm [thread:$0]  %s1587, 128, %s1584, %s1572
        $region120: #{tpu_custom_call.1} parent=63 // pred_fallthru
          _
      $region64: #{tpu_custom_call.1} parent=5 // pred_fallthru
        _
      %p1590 = scmp.le.s32.totalorder 2, %s32
      // Predicated region
      $region121: #{tpu_custom_call.1} parent=5 // pred_check
        %p1591 = pneg %p1590
      $region122: #{tpu_custom_call.1} parent=5 // pred_check_branch
        %1593 = sbr.rel (%p1591) target = $region124
      $region123: #{tpu_custom_call.1} parent=5 // pred_region
        %s1594 = ssub.s32 %s32, 2
        // Predicated region
        $region125: #{tpu_custom_call.1} parent=123 // pred_check
          %p1595 = pneg %p346
        $region126: #{tpu_custom_call.1} parent=123 // pred_check_branch
          %1597 = sbr.rel (%p1595) target = $region128
        $region127: #{tpu_custom_call.1} parent=123 // pred_region
          %s1598 = sand.u32 %s331, 1
          %s1599 = scalar_lea.sflag [#allocation7], %s1598
          %s1600 = sand.u32 %s331, 1
          %s1601 = smul.addr %s1600, 8
          %s1602 = scalar_lea.vmem [#allocation23], %s1601
          %1603 = dma.done %s1599, 128
        $region128: #{tpu_custom_call.1} parent=123 // pred_fallthru
          _
      $region124: #{tpu_custom_call.1} parent=5 // pred_fallthru
        _
    $region6: #{tpu_custom_call.1} parent=1 // loop_footer
      %s36 = sadd.s32 1, %s32
    $region7: #{tpu_custom_call.1} parent=1 // loop_footer_branch
      %31 = sbr.rel target = $region3
    $region8: #{tpu_custom_call.1} parent=1 // loop_exit
      _
    %1604 = vsyncpa [#allocation6], 1
    %s1605 = scalar_lea.sflag [#allocation6], 1
    %1606 = vsyncpa %s1605, 1
    %1607 = vsyncpa [#allocation9], 1
    %s1608 = scalar_lea.sflag [#allocation9], 1
    %1609 = vsyncpa %s1608, 1
    %1610 = vsyncpa [#allocation12], 1
    %s1611 = scalar_lea.sflag [#allocation12], 1
    %1612 = vsyncpa %s1611, 1
    %1613 = vsyncpa [#allocation15], 1
    %1614 = vsyncpa [#allocation18], 1
    %1615 = vsyncpa [#allocation21], 1
    %1616 = vsyncpa [#allocation7], 1
    %s1617 = scalar_lea.sflag [#allocation7], 1
    %1618 = vsyncpa %s1617, 1

</llo_original>
